<compile_context>
chip_gen: v6e
topology: v6e:2x2x1
jax: 0.10.0
libtpu: 0.0.40
codegen_flags: <defaults>
</compile_context>

<pallas_src>
import jax
import jax.numpy as jnp
from jax.experimental import pallas as pl
from jax.experimental.pallas import tpu as pltpu

LANE = 128
SUBLANE = 8
MAX_RC = 128            # bound on the statically-unrolled contraction chunk


def _cdiv(a, b):
    return -(-a // b)


# --------------------------------------------------------------------------- #
# Kernel
# --------------------------------------------------------------------------- #
def _lc_kernel(p_ref, w_ref, b_ref, o_ref, acc_ref):
    """One (lane-tile, R-chunk) grid step.

    p_ref:   (Rc, B,  TP)  input patches; positions on the 128-lane axis
    w_ref:   (Rc, OC, TP)  per-position weights
    b_ref:   (OC, TP)      bias
    o_ref:   (B,  OC, TP)  output
    acc_ref: (B,  OC, TP)  f32 accumulator scratch (persists across the R axis)
    """
    r_step = pl.program_id(1)

    @pl.when(r_step == 0)
    def _init():
        # Bias is the accumulator's initial value (saves a separate add).
        acc_ref[...] = jnp.broadcast_to(
            b_ref[...].astype(jnp.float32)[None, :, :], acc_ref.shape)

    # Multiply-accumulate over the small contraction axis.  Each iteration only
    # touches (B + OC + B*OC) 128-lane rows of f32, so nothing spills; plain
    # VPU multiplies/adds — no XLU reduce, no micro-MXU matmuls.
    acc = acc_ref[...]
    for r in range(p_ref.shape[0]):                    # static unroll, Rc <= MAX_RC
        xr = p_ref[r].astype(jnp.float32)              # (B,  TP)
        wr = w_ref[r].astype(jnp.float32)              # (OC, TP)
        acc = acc + xr[:, None, :] * wr[None, :, :]    # (B, OC, TP)
    acc_ref[...] = acc

    @pl.when(r_step == pl.num_programs(1) - 1)
    def _finalize():
        o_ref[...] = acc_ref[...].astype(o_ref.dtype)


# --------------------------------------------------------------------------- #
# Tiling / VMEM heuristics
# --------------------------------------------------------------------------- #
def _vmem_limit_bytes():
    """~3/4 of physical VMEM, clamped to [32, 96] MiB (v5e/v6e -> 96, v7x -> 48)."""
    try:
        cap = pltpu.get_tpu_info().vmem_capacity_bytes
    except Exception:            # off-TPU tracing / older jax: assume v7x-sized
        cap = 64 << 20
    return int(min(96 << 20, max(32 << 20, (cap * 3) // 4)))


def _choose_tiling(B, OC, R, P, *, target_step_bytes, max_ws_bytes):
    """Pick (TP, P_pad, Rc, R_pad).

    TP: positions per grid step (multiple of 128), sized so each step moves
        ~target_step_bytes of HBM traffic (amortizes the ~0.35 us/step fixed
        overhead) while the double-buffered working set stays under
        max_ws_bytes (fits v7x's 64 MiB VMEM with headroom).
    Rc: contraction rows per step (full R unless too big, then grid-chunked).
    """
    n_lane = _cdiv(P, LANE)

    def dma_per_lane(rc):     # f32 bytes DMA'd per 128-lane tile per R-chunk
        return 4 * LANE * (B * rc + OC * rc + OC + B * OC)

    def ws_per_lane(rc):      # double-buffered in/out tiles + f32 accumulator
        return 2 * dma_per_lane(rc) + 4 * LANE * B * OC

    # R-chunking only when even a single 128-lane tile with full R is too big.
    Rc = R
    if ws_per_lane(R) > max_ws_bytes:
        const = 8 * LANE * (OC + B * OC) + 4 * LANE * B * OC
        denom = 8 * LANE * (B + OC)
        rc = max(SUBLANE, ((max_ws_bytes - const) // denom) // SUBLANE * SUBLANE)
        Rc = min(rc, _cdiv(R, SUBLANE) * SUBLANE)
    Rc = max(1, min(Rc, MAX_RC))          # also bounds the static unroll
    R_pad = _cdiv(R, Rc) * Rc

    # Lane tiles per step: from the DMA target, capped by the working set.
    tiles = min(max(1, target_step_bytes // dma_per_lane(Rc)),
                max(1, max_ws_bytes // ws_per_lane(Rc)),
                n_lane)
    tiles = max(1, tiles)
    if n_lane >= 4:                        # >=4 steps -> >=2 per v7x TensorCore
        tiles = max(1, min(tiles, n_lane // 4))
    n_steps = _cdiv(n_lane, tiles)
    if n_steps > 1 and n_steps % 2 == 1:   # prefer an even step count (megacore)
        tiles = max(1, _cdiv(n_lane, n_steps + 1))

    TP = tiles * LANE
    P_pad = _cdiv(P, TP) * TP
    return TP, P_pad, Rc, R_pad


# --------------------------------------------------------------------------- #
# Builder: one-time weight re-layout + per-call forward
# --------------------------------------------------------------------------- #
def make_locally_connected(weight, bias, kernel_size, stride=1, *, batch_hint=8):
    """Returns forward(x) for fixed parameters.

    weight: (out_channels, in_channels, OH, OW, K, K)   (torch layout)
    bias:   (out_channels, OH, OW)

    The lane-dense re-layout / zero-padding of the parameters and the tiling
    choice happen once here, not per forward call.  `batch_hint` is only a
    tiling hint; forward() works for any batch size.
    """
    Cw, OC, OH, OW, K, K2 = weight.shape
    K = int(K)
    assert K == K2 == int(kernel_size), (K, K2, kernel_size)
    # torch einsum 'bcih,coih->bo' contracts x channels against weight dim 0,
    # so the module is only self-consistent when in_channels == out_channels.
    assert Cw == OC, (
        "LocallyConnectedLayer semantics require in_channels == out_channels "
        f"(weight.shape[0]={Cw} vs weight.shape[1]={OC})")
    assert bias.shape == (Cw, OH, OW), bias.shape
    s = int(stride)
    R = Cw * K * K
    P = OH * OW

    vmem_limit = _vmem_limit_bytes()
    TP, P_pad, Rc, R_pad = _choose_tiling(
        int(batch_hint), OC, R, P,
        target_step_bytes=8 << 20,
        max_ws_bytes=min(32 << 20, vmem_limit // 2))
    n_p = P_pad // TP
    n_r = R_pad // Rc

    # weight[c, o, i, j, kh, kw] -> ((c, kh, kw), o, (i, j)): positions lane-dense,
    # contraction rows on the leading axis for cheap per-row indexing in-kernel.
    w_t = jnp.transpose(weight, (0, 4, 5, 1, 2, 3)).reshape(R, OC, P)
    b_t = bias.reshape(OC, P)
    w_t = jnp.pad(w_t, ((0, R_pad - R), (0, 0), (0, P_pad - P)))
    b_t = jnp.pad(b_t, ((0, 0), (0, P_pad - P)))

    def forward(x):
        B, C, H, W = x.shape
        assert C == Cw, (C, Cw)
        assert (H - K) // s + 1 == OH and (W - K) // s + 1 == OW, (H, W, OH, OW)

        # --- sliding-window patches, positions on the lane axis --------------
        # TODO(synk): fuse this im2col gather into the kernel (manual DMA of the
        # needed x rows per lane tile + in-VMEM shifted slices) to avoid the
        # K^2-amplified HBM copy of x; negligible at small sizes, dominant as
        # C*H*W grows, but it conflicts with the flat lane-dense P layout.
        rows = jnp.arange(OH)[:, None] * s + jnp.arange(K)[None, :]    # (OH, K)
        cols = jnp.arange(OW)[:, None] * s + jnp.arange(K)[None, :]    # (OW, K)
        patches6 = x[:, :, rows, :][:, :, :, :, cols]                  # (B,C,OH,Kh,OW,Kw)
        # -> (c, kh, kw, b, i, j) -> (R, B, P), r=(c,kh,kw) matching w_t.
        patches = jnp.transpose(patches6, (1, 3, 5, 0, 2, 4)).reshape(R, B, P)
        patches = jnp.pad(patches, ((0, R_pad - R), (0, 0), (0, P_pad - P)))

        out = pl.pallas_call(
            _lc_kernel,
            out_shape=jax.ShapeDtypeStruct((B, OC, P_pad), x.dtype),
            grid_spec=pltpu.PrefetchScalarGridSpec(
                num_scalar_prefetch=0,
                grid=(n_p, n_r),
                in_specs=[
                    pl.BlockSpec((Rc, B, TP), lambda i, k: (k, 0, i)),
                    pl.BlockSpec((Rc, OC, TP), lambda i, k: (k, 0, i)),
                    pl.BlockSpec((OC, TP), lambda i, k: (0, i)),
                ],
                out_specs=pl.BlockSpec((B, OC, TP), lambda i, k: (0, 0, i)),
                scratch_shapes=[pltpu.VMEM((B, OC, TP), jnp.float32)],
            ),
            compiler_params=pltpu.CompilerParams(
                dimension_semantics=("parallel", "arbitrary"),
                vmem_limit_bytes=vmem_limit,
            ),
        )(patches, w_t, b_t)

        # (B, OC, P_pad) -> un-pad -> NCHW; row-major reshape is free.
        return out[:, :, :P].reshape(B, OC, OH, OW)

    return forward


# --------------------------------------------------------------------------- #
# Pure-JAX reference (independent of the kernel path)
# --------------------------------------------------------------------------- #
def _reference(x, weight, bias, K, s):
    B, C, H, W = x.shape
    OH = (H - K) // s + 1
    OW = (W - K) // s + 1
    rows = jnp.arange(OH)[:, None] * s + jnp.arange(K)[None, :]
    cols = jnp.arange(OW)[:, None] * s + jnp.arange(K)[None, :]
    patches6 = x[:, :, rows, :][:, :, :, :, cols]        # (B, C, OH, Kh, OW, Kw)
    out = jnp.einsum('bcikjl,coijkl->boij', patches6, weight)
    return out + bias[None]


if __name__ == "__main__":
    # module hyper-params (in_channels must equal out_channels, see torch einsum)
    B, IN_C, OUT_C = 2, 4, 4
    H, W = 16, 16
    K, S, PAD = 3, 1, 0
    OH = (H - K + 2 * PAD) // S + 1
    OW = (W - K + 2 * PAD) // S + 1

    key = jax.random.PRNGKey(0)
    kx, kw, kb = jax.random.split(key, 3)
    x = jax.random.normal(kx, (B, IN_C, H, W), dtype=jnp.float32)
    weight = jax.random.normal(kw, (OUT_C, IN_C, OH, OW, K, K), dtype=jnp.float32)
    bias = jax.random.normal(kb, (OUT_C, OH, OW), dtype=jnp.float32)

    forward = make_locally_connected(weight, bias, K, S, batch_hint=B)
    out = jax.block_until_ready(jax.jit(forward)(x))

    ref = _reference(x, weight, bias, K, S)
    assert out.shape == (B, OUT_C, OH, OW), out.shape
    assert out.dtype == jnp.float32, out.dtype
    max_err = float(jnp.max(jnp.abs(out - ref)))
    assert max_err < 1e-4, max_err

    print("KERNEL_OK")
</pallas_src>

<mosaic_0001>
module attributes {stable_mosaic.version = 11 : i64} {
  func.func @_lc_kernel(%arg0: i32, %arg1: i32, %arg2: memref<36x2x256xf32, #tpu.memory_space<vmem>>, %arg3: memref<36x4x256xf32, #tpu.memory_space<vmem>>, %arg4: memref<4x256xf32, #tpu.memory_space<vmem>>, %arg5: memref<2x4x256xf32, #tpu.memory_space<vmem>>, %arg6: memref<2x4x256xf32, #tpu.memory_space<vmem>>) attributes {dimension_semantics = [#tpu.dimension_semantics<parallel>, #tpu.dimension_semantics<arbitrary>], iteration_bounds = array<i64: 1, 1>, scalar_prefetch = 0 : i64, scratch_operands = 1 : i64, tpu.core_type = #tpu.core_type<tc>, window_params = [{transform_indices = @transform_0, window_bounds = array<i64: 36, 2, 256>}, {transform_indices = @transform_1, window_bounds = array<i64: 36, 4, 256>}, {transform_indices = @transform_2, window_bounds = array<i64: 4, 256>}, {transform_indices = @transform_3, window_bounds = array<i64: 2, 4, 256>}]} {
    %c0_i32 = arith.constant 0 : i32
    %0 = arith.cmpi eq, %arg1, %c0_i32 : i32
    %1 = arith.extui %0 : i1 to i32
    %c0_i32_0 = arith.constant 0 : i32
    %2 = arith.cmpi ne, %1, %c0_i32_0 : i32
    scf.if %2 {
      %c0_189 = arith.constant 0 : index
      %c0_190 = arith.constant 0 : index
      %368 = vector.load %arg4[%c0_189, %c0_190] : memref<4x256xf32, #tpu.memory_space<vmem>>, vector<4x256xf32>
      %369 = vector.shape_cast %368 : vector<4x256xf32> to vector<1x4x256xf32>
      %370 = vector.shape_cast %369 : vector<1x4x256xf32> to vector<1x4x256xf32>
      %371 = vector.broadcast %370 : vector<1x4x256xf32> to vector<2x4x256xf32>
      %c0_191 = arith.constant 0 : index
      %c0_192 = arith.constant 0 : index
      %c0_193 = arith.constant 0 : index
      %372 = vector.load %arg6[%c0_191, %c0_192, %c0_193] : memref<2x4x256xf32, #tpu.memory_space<vmem>>, vector<2x4x256xf32>
      tpu.vector_store %arg6[%c0_191, %c0_192, %c0_193], %371 {strides = array<i32>} : memref<2x4x256xf32, #tpu.memory_space<vmem>>, vector<2x4x256xf32>,
    } else {
    }
    %c0 = arith.constant 0 : index
    %c0_1 = arith.constant 0 : index
    %c0_2 = arith.constant 0 : index
    %3 = vector.load %arg6[%c0, %c0_1, %c0_2] : memref<2x4x256xf32, #tpu.memory_space<vmem>>, vector<2x4x256xf32>
    %c0_3 = arith.constant 0 : index
    %c0_4 = arith.constant 0 : index
    %c0_5 = arith.constant 0 : index
    %4 = vector.load %arg2[%c0_3, %c0_4, %c0_5] : memref<36x2x256xf32, #tpu.memory_space<vmem>>, vector<1x2x256xf32>
    %5 = vector.shape_cast %4 : vector<1x2x256xf32> to vector<2x256xf32>
    %c0_6 = arith.constant 0 : index
    %c0_7 = arith.constant 0 : index
    %c0_8 = arith.constant 0 : index
    %6 = vector.load %arg3[%c0_6, %c0_7, %c0_8] : memref<36x4x256xf32, #tpu.memory_space<vmem>>, vector<1x4x256xf32>
    %7 = vector.shape_cast %6 : vector<1x4x256xf32> to vector<4x256xf32>
    %8 = vector.shape_cast %5 : vector<2x256xf32> to vector<2x1x256xf32>
    %9 = vector.shape_cast %7 : vector<4x256xf32> to vector<1x4x256xf32>
    %10 = vector.broadcast %8 : vector<2x1x256xf32> to vector<2x4x256xf32>
    %11 = vector.broadcast %9 : vector<1x4x256xf32> to vector<2x4x256xf32>
    %12 = arith.mulf %10, %11 : vector<2x4x256xf32>
    %13 = arith.addf %3, %12 : vector<2x4x256xf32>
    %c1 = arith.constant 1 : index
    %c0_9 = arith.constant 0 : index
    %c0_10 = arith.constant 0 : index
    %14 = vector.load %arg2[%c1, %c0_9, %c0_10] : memref<36x2x256xf32, #tpu.memory_space<vmem>>, vector<1x2x256xf32>
    %15 = vector.shape_cast %14 : vector<1x2x256xf32> to vector<2x256xf32>
    %c1_11 = arith.constant 1 : index
    %c0_12 = arith.constant 0 : index
    %c0_13 = arith.constant 0 : index
    %16 = vector.load %arg3[%c1_11, %c0_12, %c0_13] : memref<36x4x256xf32, #tpu.memory_space<vmem>>, vector<1x4x256xf32>
    %17 = vector.shape_cast %16 : vector<1x4x256xf32> to vector<4x256xf32>
    %18 = vector.shape_cast %15 : vector<2x256xf32> to vector<2x1x256xf32>
    %19 = vector.shape_cast %17 : vector<4x256xf32> to vector<1x4x256xf32>
    %20 = vector.broadcast %18 : vector<2x1x256xf32> to vector<2x4x256xf32>
    %21 = vector.broadcast %19 : vector<1x4x256xf32> to vector<2x4x256xf32>
    %22 = arith.mulf %20, %21 : vector<2x4x256xf32>
    %23 = arith.addf %13, %22 : vector<2x4x256xf32>
    %c2 = arith.constant 2 : index
    %c0_14 = arith.constant 0 : index
    %c0_15 = arith.constant 0 : index
    %24 = vector.load %arg2[%c2, %c0_14, %c0_15] : memref<36x2x256xf32, #tpu.memory_space<vmem>>, vector<1x2x256xf32>
    %25 = vector.shape_cast %24 : vector<1x2x256xf32> to vector<2x256xf32>
    %c2_16 = arith.constant 2 : index
    %c0_17 = arith.constant 0 : index
    %c0_18 = arith.constant 0 : index
    %26 = vector.load %arg3[%c2_16, %c0_17, %c0_18] : memref<36x4x256xf32, #tpu.memory_space<vmem>>, vector<1x4x256xf32>
    %27 = vector.shape_cast %26 : vector<1x4x256xf32> to vector<4x256xf32>
    %28 = vector.shape_cast %25 : vector<2x256xf32> to vector<2x1x256xf32>
    %29 = vector.shape_cast %27 : vector<4x256xf32> to vector<1x4x256xf32>
    %30 = vector.broadcast %28 : vector<2x1x256xf32> to vector<2x4x256xf32>
    %31 = vector.broadcast %29 : vector<1x4x256xf32> to vector<2x4x256xf32>
    %32 = arith.mulf %30, %31 : vector<2x4x256xf32>
    %33 = arith.addf %23, %32 : vector<2x4x256xf32>
    %c3 = arith.constant 3 : index
    %c0_19 = arith.constant 0 : index
    %c0_20 = arith.constant 0 : index
    %34 = vector.load %arg2[%c3, %c0_19, %c0_20] : memref<36x2x256xf32, #tpu.memory_space<vmem>>, vector<1x2x256xf32>
    %35 = vector.shape_cast %34 : vector<1x2x256xf32> to vector<2x256xf32>
    %c3_21 = arith.constant 3 : index
    %c0_22 = arith.constant 0 : index
    %c0_23 = arith.constant 0 : index
    %36 = vector.load %arg3[%c3_21, %c0_22, %c0_23] : memref<36x4x256xf32, #tpu.memory_space<vmem>>, vector<1x4x256xf32>
    %37 = vector.shape_cast %36 : vector<1x4x256xf32> to vector<4x256xf32>
    %38 = vector.shape_cast %35 : vector<2x256xf32> to vector<2x1x256xf32>
    %39 = vector.shape_cast %37 : vector<4x256xf32> to vector<1x4x256xf32>
    %40 = vector.broadcast %38 : vector<2x1x256xf32> to vector<2x4x256xf32>
    %41 = vector.broadcast %39 : vector<1x4x256xf32> to vector<2x4x256xf32>
    %42 = arith.mulf %40, %41 : vector<2x4x256xf32>
    %43 = arith.addf %33, %42 : vector<2x4x256xf32>
    %c4 = arith.constant 4 : index
    %c0_24 = arith.constant 0 : index
    %c0_25 = arith.constant 0 : index
    %44 = vector.load %arg2[%c4, %c0_24, %c0_25] : memref<36x2x256xf32, #tpu.memory_space<vmem>>, vector<1x2x256xf32>
    %45 = vector.shape_cast %44 : vector<1x2x256xf32> to vector<2x256xf32>
    %c4_26 = arith.constant 4 : index
    %c0_27 = arith.constant 0 : index
    %c0_28 = arith.constant 0 : index
    %46 = vector.load %arg3[%c4_26, %c0_27, %c0_28] : memref<36x4x256xf32, #tpu.memory_space<vmem>>, vector<1x4x256xf32>
    %47 = vector.shape_cast %46 : vector<1x4x256xf32> to vector<4x256xf32>
    %48 = vector.shape_cast %45 : vector<2x256xf32> to vector<2x1x256xf32>
    %49 = vector.shape_cast %47 : vector<4x256xf32> to vector<1x4x256xf32>
    %50 = vector.broadcast %48 : vector<2x1x256xf32> to vector<2x4x256xf32>
    %51 = vector.broadcast %49 : vector<1x4x256xf32> to vector<2x4x256xf32>
    %52 = arith.mulf %50, %51 : vector<2x4x256xf32>
    %53 = arith.addf %43, %52 : vector<2x4x256xf32>
    %c5 = arith.constant 5 : index
    %c0_29 = arith.constant 0 : index
    %c0_30 = arith.constant 0 : index
    %54 = vector.load %arg2[%c5, %c0_29, %c0_30] : memref<36x2x256xf32, #tpu.memory_space<vmem>>, vector<1x2x256xf32>
    %55 = vector.shape_cast %54 : vector<1x2x256xf32> to vector<2x256xf32>
    %c5_31 = arith.constant 5 : index
    %c0_32 = arith.constant 0 : index
    %c0_33 = arith.constant 0 : index
    %56 = vector.load %arg3[%c5_31, %c0_32, %c0_33] : memref<36x4x256xf32, #tpu.memory_space<vmem>>, vector<1x4x256xf32>
    %57 = vector.shape_cast %56 : vector<1x4x256xf32> to vector<4x256xf32>
    %58 = vector.shape_cast %55 : vector<2x256xf32> to vector<2x1x256xf32>
    %59 = vector.shape_cast %57 : vector<4x256xf32> to vector<1x4x256xf32>
    %60 = vector.broadcast %58 : vector<2x1x256xf32> to vector<2x4x256xf32>
    %61 = vector.broadcast %59 : vector<1x4x256xf32> to vector<2x4x256xf32>
    %62 = arith.mulf %60, %61 : vector<2x4x256xf32>
    %63 = arith.addf %53, %62 : vector<2x4x256xf32>
    %c6 = arith.constant 6 : index
    %c0_34 = arith.constant 0 : index
    %c0_35 = arith.constant 0 : index
    %64 = vector.load %arg2[%c6, %c0_34, %c0_35] : memref<36x2x256xf32, #tpu.memory_space<vmem>>, vector<1x2x256xf32>
    %65 = vector.shape_cast %64 : vector<1x2x256xf32> to vector<2x256xf32>
    %c6_36 = arith.constant 6 : index
    %c0_37 = arith.constant 0 : index
    %c0_38 = arith.constant 0 : index
    %66 = vector.load %arg3[%c6_36, %c0_37, %c0_38] : memref<36x4x256xf32, #tpu.memory_space<vmem>>, vector<1x4x256xf32>
    %67 = vector.shape_cast %66 : vector<1x4x256xf32> to vector<4x256xf32>
    %68 = vector.shape_cast %65 : vector<2x256xf32> to vector<2x1x256xf32>
    %69 = vector.shape_cast %67 : vector<4x256xf32> to vector<1x4x256xf32>
    %70 = vector.broadcast %68 : vector<2x1x256xf32> to vector<2x4x256xf32>
    %71 = vector.broadcast %69 : vector<1x4x256xf32> to vector<2x4x256xf32>
    %72 = arith.mulf %70, %71 : vector<2x4x256xf32>
    %73 = arith.addf %63, %72 : vector<2x4x256xf32>
    %c7 = arith.constant 7 : index
    %c0_39 = arith.constant 0 : index
    %c0_40 = arith.constant 0 : index
    %74 = vector.load %arg2[%c7, %c0_39, %c0_40] : memref<36x2x256xf32, #tpu.memory_space<vmem>>, vector<1x2x256xf32>
    %75 = vector.shape_cast %74 : vector<1x2x256xf32> to vector<2x256xf32>
    %c7_41 = arith.constant 7 : index
    %c0_42 = arith.constant 0 : index
    %c0_43 = arith.constant 0 : index
    %76 = vector.load %arg3[%c7_41, %c0_42, %c0_43] : memref<36x4x256xf32, #tpu.memory_space<vmem>>, vector<1x4x256xf32>
    %77 = vector.shape_cast %76 : vector<1x4x256xf32> to vector<4x256xf32>
    %78 = vector.shape_cast %75 : vector<2x256xf32> to vector<2x1x256xf32>
    %79 = vector.shape_cast %77 : vector<4x256xf32> to vector<1x4x256xf32>
    %80 = vector.broadcast %78 : vector<2x1x256xf32> to vector<2x4x256xf32>
    %81 = vector.broadcast %79 : vector<1x4x256xf32> to vector<2x4x256xf32>
    %82 = arith.mulf %80, %81 : vector<2x4x256xf32>
    %83 = arith.addf %73, %82 : vector<2x4x256xf32>
    %c8 = arith.constant 8 : index
    %c0_44 = arith.constant 0 : index
    %c0_45 = arith.constant 0 : index
    %84 = vector.load %arg2[%c8, %c0_44, %c0_45] : memref<36x2x256xf32, #tpu.memory_space<vmem>>, vector<1x2x256xf32>
    %85 = vector.shape_cast %84 : vector<1x2x256xf32> to vector<2x256xf32>
    %c8_46 = arith.constant 8 : index
    %c0_47 = arith.constant 0 : index
    %c0_48 = arith.constant 0 : index
    %86 = vector.load %arg3[%c8_46, %c0_47, %c0_48] : memref<36x4x256xf32, #tpu.memory_space<vmem>>, vector<1x4x256xf32>
    %87 = vector.shape_cast %86 : vector<1x4x256xf32> to vector<4x256xf32>
    %88 = vector.shape_cast %85 : vector<2x256xf32> to vector<2x1x256xf32>
    %89 = vector.shape_cast %87 : vector<4x256xf32> to vector<1x4x256xf32>
    %90 = vector.broadcast %88 : vector<2x1x256xf32> to vector<2x4x256xf32>
    %91 = vector.broadcast %89 : vector<1x4x256xf32> to vector<2x4x256xf32>
    %92 = arith.mulf %90, %91 : vector<2x4x256xf32>
    %93 = arith.addf %83, %92 : vector<2x4x256xf32>
    %c9 = arith.constant 9 : index
    %c0_49 = arith.constant 0 : index
    %c0_50 = arith.constant 0 : index
    %94 = vector.load %arg2[%c9, %c0_49, %c0_50] : memref<36x2x256xf32, #tpu.memory_space<vmem>>, vector<1x2x256xf32>
    %95 = vector.shape_cast %94 : vector<1x2x256xf32> to vector<2x256xf32>
    %c9_51 = arith.constant 9 : index
    %c0_52 = arith.constant 0 : index
    %c0_53 = arith.constant 0 : index
    %96 = vector.load %arg3[%c9_51, %c0_52, %c0_53] : memref<36x4x256xf32, #tpu.memory_space<vmem>>, vector<1x4x256xf32>
    %97 = vector.shape_cast %96 : vector<1x4x256xf32> to vector<4x256xf32>
    %98 = vector.shape_cast %95 : vector<2x256xf32> to vector<2x1x256xf32>
    %99 = vector.shape_cast %97 : vector<4x256xf32> to vector<1x4x256xf32>
    %100 = vector.broadcast %98 : vector<2x1x256xf32> to vector<2x4x256xf32>
    %101 = vector.broadcast %99 : vector<1x4x256xf32> to vector<2x4x256xf32>
    %102 = arith.mulf %100, %101 : vector<2x4x256xf32>
    %103 = arith.addf %93, %102 : vector<2x4x256xf32>
    %c10 = arith.constant 10 : index
    %c0_54 = arith.constant 0 : index
    %c0_55 = arith.constant 0 : index
    %104 = vector.load %arg2[%c10, %c0_54, %c0_55] : memref<36x2x256xf32, #tpu.memory_space<vmem>>, vector<1x2x256xf32>
    %105 = vector.shape_cast %104 : vector<1x2x256xf32> to vector<2x256xf32>
    %c10_56 = arith.constant 10 : index
    %c0_57 = arith.constant 0 : index
    %c0_58 = arith.constant 0 : index
    %106 = vector.load %arg3[%c10_56, %c0_57, %c0_58] : memref<36x4x256xf32, #tpu.memory_space<vmem>>, vector<1x4x256xf32>
    %107 = vector.shape_cast %106 : vector<1x4x256xf32> to vector<4x256xf32>
    %108 = vector.shape_cast %105 : vector<2x256xf32> to vector<2x1x256xf32>
    %109 = vector.shape_cast %107 : vector<4x256xf32> to vector<1x4x256xf32>
    %110 = vector.broadcast %108 : vector<2x1x256xf32> to vector<2x4x256xf32>
    %111 = vector.broadcast %109 : vector<1x4x256xf32> to vector<2x4x256xf32>
    %112 = arith.mulf %110, %111 : vector<2x4x256xf32>
    %113 = arith.addf %103, %112 : vector<2x4x256xf32>
    %c11 = arith.constant 11 : index
    %c0_59 = arith.constant 0 : index
    %c0_60 = arith.constant 0 : index
    %114 = vector.load %arg2[%c11, %c0_59, %c0_60] : memref<36x2x256xf32, #tpu.memory_space<vmem>>, vector<1x2x256xf32>
    %115 = vector.shape_cast %114 : vector<1x2x256xf32> to vector<2x256xf32>
    %c11_61 = arith.constant 11 : index
    %c0_62 = arith.constant 0 : index
    %c0_63 = arith.constant 0 : index
    %116 = vector.load %arg3[%c11_61, %c0_62, %c0_63] : memref<36x4x256xf32, #tpu.memory_space<vmem>>, vector<1x4x256xf32>
    %117 = vector.shape_cast %116 : vector<1x4x256xf32> to vector<4x256xf32>
    %118 = vector.shape_cast %115 : vector<2x256xf32> to vector<2x1x256xf32>
    %119 = vector.shape_cast %117 : vector<4x256xf32> to vector<1x4x256xf32>
    %120 = vector.broadcast %118 : vector<2x1x256xf32> to vector<2x4x256xf32>
    %121 = vector.broadcast %119 : vector<1x4x256xf32> to vector<2x4x256xf32>
    %122 = arith.mulf %120, %121 : vector<2x4x256xf32>
    %123 = arith.addf %113, %122 : vector<2x4x256xf32>
    %c12 = arith.constant 12 : index
    %c0_64 = arith.constant 0 : index
    %c0_65 = arith.constant 0 : index
    %124 = vector.load %arg2[%c12, %c0_64, %c0_65] : memref<36x2x256xf32, #tpu.memory_space<vmem>>, vector<1x2x256xf32>
    %125 = vector.shape_cast %124 : vector<1x2x256xf32> to vector<2x256xf32>
    %c12_66 = arith.constant 12 : index
    %c0_67 = arith.constant 0 : index
    %c0_68 = arith.constant 0 : index
    %126 = vector.load %arg3[%c12_66, %c0_67, %c0_68] : memref<36x4x256xf32, #tpu.memory_space<vmem>>, vector<1x4x256xf32>
    %127 = vector.shape_cast %126 : vector<1x4x256xf32> to vector<4x256xf32>
    %128 = vector.shape_cast %125 : vector<2x256xf32> to vector<2x1x256xf32>
    %129 = vector.shape_cast %127 : vector<4x256xf32> to vector<1x4x256xf32>
    %130 = vector.broadcast %128 : vector<2x1x256xf32> to vector<2x4x256xf32>
    %131 = vector.broadcast %129 : vector<1x4x256xf32> to vector<2x4x256xf32>
    %132 = arith.mulf %130, %131 : vector<2x4x256xf32>
    %133 = arith.addf %123, %132 : vector<2x4x256xf32>
    %c13 = arith.constant 13 : index
    %c0_69 = arith.constant 0 : index
    %c0_70 = arith.constant 0 : index
    %134 = vector.load %arg2[%c13, %c0_69, %c0_70] : memref<36x2x256xf32, #tpu.memory_space<vmem>>, vector<1x2x256xf32>
    %135 = vector.shape_cast %134 : vector<1x2x256xf32> to vector<2x256xf32>
    %c13_71 = arith.constant 13 : index
    %c0_72 = arith.constant 0 : index
    %c0_73 = arith.constant 0 : index
    %136 = vector.load %arg3[%c13_71, %c0_72, %c0_73] : memref<36x4x256xf32, #tpu.memory_space<vmem>>, vector<1x4x256xf32>
    %137 = vector.shape_cast %136 : vector<1x4x256xf32> to vector<4x256xf32>
    %138 = vector.shape_cast %135 : vector<2x256xf32> to vector<2x1x256xf32>
    %139 = vector.shape_cast %137 : vector<4x256xf32> to vector<1x4x256xf32>
    %140 = vector.broadcast %138 : vector<2x1x256xf32> to vector<2x4x256xf32>
    %141 = vector.broadcast %139 : vector<1x4x256xf32> to vector<2x4x256xf32>
    %142 = arith.mulf %140, %141 : vector<2x4x256xf32>
    %143 = arith.addf %133, %142 : vector<2x4x256xf32>
    %c14 = arith.constant 14 : index
    %c0_74 = arith.constant 0 : index
    %c0_75 = arith.constant 0 : index
    %144 = vector.load %arg2[%c14, %c0_74, %c0_75] : memref<36x2x256xf32, #tpu.memory_space<vmem>>, vector<1x2x256xf32>
    %145 = vector.shape_cast %144 : vector<1x2x256xf32> to vector<2x256xf32>
    %c14_76 = arith.constant 14 : index
    %c0_77 = arith.constant 0 : index
    %c0_78 = arith.constant 0 : index
    %146 = vector.load %arg3[%c14_76, %c0_77, %c0_78] : memref<36x4x256xf32, #tpu.memory_space<vmem>>, vector<1x4x256xf32>
    %147 = vector.shape_cast %146 : vector<1x4x256xf32> to vector<4x256xf32>
    %148 = vector.shape_cast %145 : vector<2x256xf32> to vector<2x1x256xf32>
    %149 = vector.shape_cast %147 : vector<4x256xf32> to vector<1x4x256xf32>
    %150 = vector.broadcast %148 : vector<2x1x256xf32> to vector<2x4x256xf32>
    %151 = vector.broadcast %149 : vector<1x4x256xf32> to vector<2x4x256xf32>
    %152 = arith.mulf %150, %151 : vector<2x4x256xf32>
    %153 = arith.addf %143, %152 : vector<2x4x256xf32>
    %c15 = arith.constant 15 : index
    %c0_79 = arith.constant 0 : index
    %c0_80 = arith.constant 0 : index
    %154 = vector.load %arg2[%c15, %c0_79, %c0_80] : memref<36x2x256xf32, #tpu.memory_space<vmem>>, vector<1x2x256xf32>
    %155 = vector.shape_cast %154 : vector<1x2x256xf32> to vector<2x256xf32>
    %c15_81 = arith.constant 15 : index
    %c0_82 = arith.constant 0 : index
    %c0_83 = arith.constant 0 : index
    %156 = vector.load %arg3[%c15_81, %c0_82, %c0_83] : memref<36x4x256xf32, #tpu.memory_space<vmem>>, vector<1x4x256xf32>
    %157 = vector.shape_cast %156 : vector<1x4x256xf32> to vector<4x256xf32>
    %158 = vector.shape_cast %155 : vector<2x256xf32> to vector<2x1x256xf32>
    %159 = vector.shape_cast %157 : vector<4x256xf32> to vector<1x4x256xf32>
    %160 = vector.broadcast %158 : vector<2x1x256xf32> to vector<2x4x256xf32>
    %161 = vector.broadcast %159 : vector<1x4x256xf32> to vector<2x4x256xf32>
    %162 = arith.mulf %160, %161 : vector<2x4x256xf32>
    %163 = arith.addf %153, %162 : vector<2x4x256xf32>
    %c16 = arith.constant 16 : index
    %c0_84 = arith.constant 0 : index
    %c0_85 = arith.constant 0 : index
    %164 = vector.load %arg2[%c16, %c0_84, %c0_85] : memref<36x2x256xf32, #tpu.memory_space<vmem>>, vector<1x2x256xf32>
    %165 = vector.shape_cast %164 : vector<1x2x256xf32> to vector<2x256xf32>
    %c16_86 = arith.constant 16 : index
    %c0_87 = arith.constant 0 : index
    %c0_88 = arith.constant 0 : index
    %166 = vector.load %arg3[%c16_86, %c0_87, %c0_88] : memref<36x4x256xf32, #tpu.memory_space<vmem>>, vector<1x4x256xf32>
    %167 = vector.shape_cast %166 : vector<1x4x256xf32> to vector<4x256xf32>
    %168 = vector.shape_cast %165 : vector<2x256xf32> to vector<2x1x256xf32>
    %169 = vector.shape_cast %167 : vector<4x256xf32> to vector<1x4x256xf32>
    %170 = vector.broadcast %168 : vector<2x1x256xf32> to vector<2x4x256xf32>
    %171 = vector.broadcast %169 : vector<1x4x256xf32> to vector<2x4x256xf32>
    %172 = arith.mulf %170, %171 : vector<2x4x256xf32>
    %173 = arith.addf %163, %172 : vector<2x4x256xf32>
    %c17 = arith.constant 17 : index
    %c0_89 = arith.constant 0 : index
    %c0_90 = arith.constant 0 : index
    %174 = vector.load %arg2[%c17, %c0_89, %c0_90] : memref<36x2x256xf32, #tpu.memory_space<vmem>>, vector<1x2x256xf32>
    %175 = vector.shape_cast %174 : vector<1x2x256xf32> to vector<2x256xf32>
    %c17_91 = arith.constant 17 : index
    %c0_92 = arith.constant 0 : index
    %c0_93 = arith.constant 0 : index
    %176 = vector.load %arg3[%c17_91, %c0_92, %c0_93] : memref<36x4x256xf32, #tpu.memory_space<vmem>>, vector<1x4x256xf32>
    %177 = vector.shape_cast %176 : vector<1x4x256xf32> to vector<4x256xf32>
    %178 = vector.shape_cast %175 : vector<2x256xf32> to vector<2x1x256xf32>
    %179 = vector.shape_cast %177 : vector<4x256xf32> to vector<1x4x256xf32>
    %180 = vector.broadcast %178 : vector<2x1x256xf32> to vector<2x4x256xf32>
    %181 = vector.broadcast %179 : vector<1x4x256xf32> to vector<2x4x256xf32>
    %182 = arith.mulf %180, %181 : vector<2x4x256xf32>
    %183 = arith.addf %173, %182 : vector<2x4x256xf32>
    %c18 = arith.constant 18 : index
    %c0_94 = arith.constant 0 : index
    %c0_95 = arith.constant 0 : index
    %184 = vector.load %arg2[%c18, %c0_94, %c0_95] : memref<36x2x256xf32, #tpu.memory_space<vmem>>, vector<1x2x256xf32>
    %185 = vector.shape_cast %184 : vector<1x2x256xf32> to vector<2x256xf32>
    %c18_96 = arith.constant 18 : index
    %c0_97 = arith.constant 0 : index
    %c0_98 = arith.constant 0 : index
    %186 = vector.load %arg3[%c18_96, %c0_97, %c0_98] : memref<36x4x256xf32, #tpu.memory_space<vmem>>, vector<1x4x256xf32>
    %187 = vector.shape_cast %186 : vector<1x4x256xf32> to vector<4x256xf32>
    %188 = vector.shape_cast %185 : vector<2x256xf32> to vector<2x1x256xf32>
    %189 = vector.shape_cast %187 : vector<4x256xf32> to vector<1x4x256xf32>
    %190 = vector.broadcast %188 : vector<2x1x256xf32> to vector<2x4x256xf32>
    %191 = vector.broadcast %189 : vector<1x4x256xf32> to vector<2x4x256xf32>
    %192 = arith.mulf %190, %191 : vector<2x4x256xf32>
    %193 = arith.addf %183, %192 : vector<2x4x256xf32>
    %c19 = arith.constant 19 : index
    %c0_99 = arith.constant 0 : index
    %c0_100 = arith.constant 0 : index
    %194 = vector.load %arg2[%c19, %c0_99, %c0_100] : memref<36x2x256xf32, #tpu.memory_space<vmem>>, vector<1x2x256xf32>
    %195 = vector.shape_cast %194 : vector<1x2x256xf32> to vector<2x256xf32>
    %c19_101 = arith.constant 19 : index
    %c0_102 = arith.constant 0 : index
    %c0_103 = arith.constant 0 : index
    %196 = vector.load %arg3[%c19_101, %c0_102, %c0_103] : memref<36x4x256xf32, #tpu.memory_space<vmem>>, vector<1x4x256xf32>
    %197 = vector.shape_cast %196 : vector<1x4x256xf32> to vector<4x256xf32>
    %198 = vector.shape_cast %195 : vector<2x256xf32> to vector<2x1x256xf32>
    %199 = vector.shape_cast %197 : vector<4x256xf32> to vector<1x4x256xf32>
    %200 = vector.broadcast %198 : vector<2x1x256xf32> to vector<2x4x256xf32>
    %201 = vector.broadcast %199 : vector<1x4x256xf32> to vector<2x4x256xf32>
    %202 = arith.mulf %200, %201 : vector<2x4x256xf32>
    %203 = arith.addf %193, %202 : vector<2x4x256xf32>
    %c20 = arith.constant 20 : index
    %c0_104 = arith.constant 0 : index
    %c0_105 = arith.constant 0 : index
    %204 = vector.load %arg2[%c20, %c0_104, %c0_105] : memref<36x2x256xf32, #tpu.memory_space<vmem>>, vector<1x2x256xf32>
    %205 = vector.shape_cast %204 : vector<1x2x256xf32> to vector<2x256xf32>
    %c20_106 = arith.constant 20 : index
    %c0_107 = arith.constant 0 : index
    %c0_108 = arith.constant 0 : index
    %206 = vector.load %arg3[%c20_106, %c0_107, %c0_108] : memref<36x4x256xf32, #tpu.memory_space<vmem>>, vector<1x4x256xf32>
    %207 = vector.shape_cast %206 : vector<1x4x256xf32> to vector<4x256xf32>
    %208 = vector.shape_cast %205 : vector<2x256xf32> to vector<2x1x256xf32>
    %209 = vector.shape_cast %207 : vector<4x256xf32> to vector<1x4x256xf32>
    %210 = vector.broadcast %208 : vector<2x1x256xf32> to vector<2x4x256xf32>
    %211 = vector.broadcast %209 : vector<1x4x256xf32> to vector<2x4x256xf32>
    %212 = arith.mulf %210, %211 : vector<2x4x256xf32>
    %213 = arith.addf %203, %212 : vector<2x4x256xf32>
    %c21 = arith.constant 21 : index
    %c0_109 = arith.constant 0 : index
    %c0_110 = arith.constant 0 : index
    %214 = vector.load %arg2[%c21, %c0_109, %c0_110] : memref<36x2x256xf32, #tpu.memory_space<vmem>>, vector<1x2x256xf32>
    %215 = vector.shape_cast %214 : vector<1x2x256xf32> to vector<2x256xf32>
    %c21_111 = arith.constant 21 : index
    %c0_112 = arith.constant 0 : index
    %c0_113 = arith.constant 0 : index
    %216 = vector.load %arg3[%c21_111, %c0_112, %c0_113] : memref<36x4x256xf32, #tpu.memory_space<vmem>>, vector<1x4x256xf32>
    %217 = vector.shape_cast %216 : vector<1x4x256xf32> to vector<4x256xf32>
    %218 = vector.shape_cast %215 : vector<2x256xf32> to vector<2x1x256xf32>
    %219 = vector.shape_cast %217 : vector<4x256xf32> to vector<1x4x256xf32>
    %220 = vector.broadcast %218 : vector<2x1x256xf32> to vector<2x4x256xf32>
    %221 = vector.broadcast %219 : vector<1x4x256xf32> to vector<2x4x256xf32>
    %222 = arith.mulf %220, %221 : vector<2x4x256xf32>
    %223 = arith.addf %213, %222 : vector<2x4x256xf32>
    %c22 = arith.constant 22 : index
    %c0_114 = arith.constant 0 : index
    %c0_115 = arith.constant 0 : index
    %224 = vector.load %arg2[%c22, %c0_114, %c0_115] : memref<36x2x256xf32, #tpu.memory_space<vmem>>, vector<1x2x256xf32>
    %225 = vector.shape_cast %224 : vector<1x2x256xf32> to vector<2x256xf32>
    %c22_116 = arith.constant 22 : index
    %c0_117 = arith.constant 0 : index
    %c0_118 = arith.constant 0 : index
    %226 = vector.load %arg3[%c22_116, %c0_117, %c0_118] : memref<36x4x256xf32, #tpu.memory_space<vmem>>, vector<1x4x256xf32>
    %227 = vector.shape_cast %226 : vector<1x4x256xf32> to vector<4x256xf32>
    %228 = vector.shape_cast %225 : vector<2x256xf32> to vector<2x1x256xf32>
    %229 = vector.shape_cast %227 : vector<4x256xf32> to vector<1x4x256xf32>
    %230 = vector.broadcast %228 : vector<2x1x256xf32> to vector<2x4x256xf32>
    %231 = vector.broadcast %229 : vector<1x4x256xf32> to vector<2x4x256xf32>
    %232 = arith.mulf %230, %231 : vector<2x4x256xf32>
    %233 = arith.addf %223, %232 : vector<2x4x256xf32>
    %c23 = arith.constant 23 : index
    %c0_119 = arith.constant 0 : index
    %c0_120 = arith.constant 0 : index
    %234 = vector.load %arg2[%c23, %c0_119, %c0_120] : memref<36x2x256xf32, #tpu.memory_space<vmem>>, vector<1x2x256xf32>
    %235 = vector.shape_cast %234 : vector<1x2x256xf32> to vector<2x256xf32>
    %c23_121 = arith.constant 23 : index
    %c0_122 = arith.constant 0 : index
    %c0_123 = arith.constant 0 : index
    %236 = vector.load %arg3[%c23_121, %c0_122, %c0_123] : memref<36x4x256xf32, #tpu.memory_space<vmem>>, vector<1x4x256xf32>
    %237 = vector.shape_cast %236 : vector<1x4x256xf32> to vector<4x256xf32>
    %238 = vector.shape_cast %235 : vector<2x256xf32> to vector<2x1x256xf32>
    %239 = vector.shape_cast %237 : vector<4x256xf32> to vector<1x4x256xf32>
    %240 = vector.broadcast %238 : vector<2x1x256xf32> to vector<2x4x256xf32>
    %241 = vector.broadcast %239 : vector<1x4x256xf32> to vector<2x4x256xf32>
    %242 = arith.mulf %240, %241 : vector<2x4x256xf32>
    %243 = arith.addf %233, %242 : vector<2x4x256xf32>
    %c24 = arith.constant 24 : index
    %c0_124 = arith.constant 0 : index
    %c0_125 = arith.constant 0 : index
    %244 = vector.load %arg2[%c24, %c0_124, %c0_125] : memref<36x2x256xf32, #tpu.memory_space<vmem>>, vector<1x2x256xf32>
    %245 = vector.shape_cast %244 : vector<1x2x256xf32> to vector<2x256xf32>
    %c24_126 = arith.constant 24 : index
    %c0_127 = arith.constant 0 : index
    %c0_128 = arith.constant 0 : index
    %246 = vector.load %arg3[%c24_126, %c0_127, %c0_128] : memref<36x4x256xf32, #tpu.memory_space<vmem>>, vector<1x4x256xf32>
    %247 = vector.shape_cast %246 : vector<1x4x256xf32> to vector<4x256xf32>
    %248 = vector.shape_cast %245 : vector<2x256xf32> to vector<2x1x256xf32>
    %249 = vector.shape_cast %247 : vector<4x256xf32> to vector<1x4x256xf32>
    %250 = vector.broadcast %248 : vector<2x1x256xf32> to vector<2x4x256xf32>
    %251 = vector.broadcast %249 : vector<1x4x256xf32> to vector<2x4x256xf32>
    %252 = arith.mulf %250, %251 : vector<2x4x256xf32>
    %253 = arith.addf %243, %252 : vector<2x4x256xf32>
    %c25 = arith.constant 25 : index
    %c0_129 = arith.constant 0 : index
    %c0_130 = arith.constant 0 : index
    %254 = vector.load %arg2[%c25, %c0_129, %c0_130] : memref<36x2x256xf32, #tpu.memory_space<vmem>>, vector<1x2x256xf32>
    %255 = vector.shape_cast %254 : vector<1x2x256xf32> to vector<2x256xf32>
    %c25_131 = arith.constant 25 : index
    %c0_132 = arith.constant 0 : index
    %c0_133 = arith.constant 0 : index
    %256 = vector.load %arg3[%c25_131, %c0_132, %c0_133] : memref<36x4x256xf32, #tpu.memory_space<vmem>>, vector<1x4x256xf32>
    %257 = vector.shape_cast %256 : vector<1x4x256xf32> to vector<4x256xf32>
    %258 = vector.shape_cast %255 : vector<2x256xf32> to vector<2x1x256xf32>
    %259 = vector.shape_cast %257 : vector<4x256xf32> to vector<1x4x256xf32>
    %260 = vector.broadcast %258 : vector<2x1x256xf32> to vector<2x4x256xf32>
    %261 = vector.broadcast %259 : vector<1x4x256xf32> to vector<2x4x256xf32>
    %262 = arith.mulf %260, %261 : vector<2x4x256xf32>
    %263 = arith.addf %253, %262 : vector<2x4x256xf32>
    %c26 = arith.constant 26 : index
    %c0_134 = arith.constant 0 : index
    %c0_135 = arith.constant 0 : index
    %264 = vector.load %arg2[%c26, %c0_134, %c0_135] : memref<36x2x256xf32, #tpu.memory_space<vmem>>, vector<1x2x256xf32>
    %265 = vector.shape_cast %264 : vector<1x2x256xf32> to vector<2x256xf32>
    %c26_136 = arith.constant 26 : index
    %c0_137 = arith.constant 0 : index
    %c0_138 = arith.constant 0 : index
    %266 = vector.load %arg3[%c26_136, %c0_137, %c0_138] : memref<36x4x256xf32, #tpu.memory_space<vmem>>, vector<1x4x256xf32>
    %267 = vector.shape_cast %266 : vector<1x4x256xf32> to vector<4x256xf32>
    %268 = vector.shape_cast %265 : vector<2x256xf32> to vector<2x1x256xf32>
    %269 = vector.shape_cast %267 : vector<4x256xf32> to vector<1x4x256xf32>
    %270 = vector.broadcast %268 : vector<2x1x256xf32> to vector<2x4x256xf32>
    %271 = vector.broadcast %269 : vector<1x4x256xf32> to vector<2x4x256xf32>
    %272 = arith.mulf %270, %271 : vector<2x4x256xf32>
    %273 = arith.addf %263, %272 : vector<2x4x256xf32>
    %c27 = arith.constant 27 : index
    %c0_139 = arith.constant 0 : index
    %c0_140 = arith.constant 0 : index
    %274 = vector.load %arg2[%c27, %c0_139, %c0_140] : memref<36x2x256xf32, #tpu.memory_space<vmem>>, vector<1x2x256xf32>
    %275 = vector.shape_cast %274 : vector<1x2x256xf32> to vector<2x256xf32>
    %c27_141 = arith.constant 27 : index
    %c0_142 = arith.constant 0 : index
    %c0_143 = arith.constant 0 : index
    %276 = vector.load %arg3[%c27_141, %c0_142, %c0_143] : memref<36x4x256xf32, #tpu.memory_space<vmem>>, vector<1x4x256xf32>
    %277 = vector.shape_cast %276 : vector<1x4x256xf32> to vector<4x256xf32>
    %278 = vector.shape_cast %275 : vector<2x256xf32> to vector<2x1x256xf32>
    %279 = vector.shape_cast %277 : vector<4x256xf32> to vector<1x4x256xf32>
    %280 = vector.broadcast %278 : vector<2x1x256xf32> to vector<2x4x256xf32>
    %281 = vector.broadcast %279 : vector<1x4x256xf32> to vector<2x4x256xf32>
    %282 = arith.mulf %280, %281 : vector<2x4x256xf32>
    %283 = arith.addf %273, %282 : vector<2x4x256xf32>
    %c28 = arith.constant 28 : index
    %c0_144 = arith.constant 0 : index
    %c0_145 = arith.constant 0 : index
    %284 = vector.load %arg2[%c28, %c0_144, %c0_145] : memref<36x2x256xf32, #tpu.memory_space<vmem>>, vector<1x2x256xf32>
    %285 = vector.shape_cast %284 : vector<1x2x256xf32> to vector<2x256xf32>
    %c28_146 = arith.constant 28 : index
    %c0_147 = arith.constant 0 : index
    %c0_148 = arith.constant 0 : index
    %286 = vector.load %arg3[%c28_146, %c0_147, %c0_148] : memref<36x4x256xf32, #tpu.memory_space<vmem>>, vector<1x4x256xf32>
    %287 = vector.shape_cast %286 : vector<1x4x256xf32> to vector<4x256xf32>
    %288 = vector.shape_cast %285 : vector<2x256xf32> to vector<2x1x256xf32>
    %289 = vector.shape_cast %287 : vector<4x256xf32> to vector<1x4x256xf32>
    %290 = vector.broadcast %288 : vector<2x1x256xf32> to vector<2x4x256xf32>
    %291 = vector.broadcast %289 : vector<1x4x256xf32> to vector<2x4x256xf32>
    %292 = arith.mulf %290, %291 : vector<2x4x256xf32>
    %293 = arith.addf %283, %292 : vector<2x4x256xf32>
    %c29 = arith.constant 29 : index
    %c0_149 = arith.constant 0 : index
    %c0_150 = arith.constant 0 : index
    %294 = vector.load %arg2[%c29, %c0_149, %c0_150] : memref<36x2x256xf32, #tpu.memory_space<vmem>>, vector<1x2x256xf32>
    %295 = vector.shape_cast %294 : vector<1x2x256xf32> to vector<2x256xf32>
    %c29_151 = arith.constant 29 : index
    %c0_152 = arith.constant 0 : index
    %c0_153 = arith.constant 0 : index
    %296 = vector.load %arg3[%c29_151, %c0_152, %c0_153] : memref<36x4x256xf32, #tpu.memory_space<vmem>>, vector<1x4x256xf32>
    %297 = vector.shape_cast %296 : vector<1x4x256xf32> to vector<4x256xf32>
    %298 = vector.shape_cast %295 : vector<2x256xf32> to vector<2x1x256xf32>
    %299 = vector.shape_cast %297 : vector<4x256xf32> to vector<1x4x256xf32>
    %300 = vector.broadcast %298 : vector<2x1x256xf32> to vector<2x4x256xf32>
    %301 = vector.broadcast %299 : vector<1x4x256xf32> to vector<2x4x256xf32>
    %302 = arith.mulf %300, %301 : vector<2x4x256xf32>
    %303 = arith.addf %293, %302 : vector<2x4x256xf32>
    %c30 = arith.constant 30 : index
    %c0_154 = arith.constant 0 : index
    %c0_155 = arith.constant 0 : index
    %304 = vector.load %arg2[%c30, %c0_154, %c0_155] : memref<36x2x256xf32, #tpu.memory_space<vmem>>, vector<1x2x256xf32>
    %305 = vector.shape_cast %304 : vector<1x2x256xf32> to vector<2x256xf32>
    %c30_156 = arith.constant 30 : index
    %c0_157 = arith.constant 0 : index
    %c0_158 = arith.constant 0 : index
    %306 = vector.load %arg3[%c30_156, %c0_157, %c0_158] : memref<36x4x256xf32, #tpu.memory_space<vmem>>, vector<1x4x256xf32>
    %307 = vector.shape_cast %306 : vector<1x4x256xf32> to vector<4x256xf32>
    %308 = vector.shape_cast %305 : vector<2x256xf32> to vector<2x1x256xf32>
    %309 = vector.shape_cast %307 : vector<4x256xf32> to vector<1x4x256xf32>
    %310 = vector.broadcast %308 : vector<2x1x256xf32> to vector<2x4x256xf32>
    %311 = vector.broadcast %309 : vector<1x4x256xf32> to vector<2x4x256xf32>
    %312 = arith.mulf %310, %311 : vector<2x4x256xf32>
    %313 = arith.addf %303, %312 : vector<2x4x256xf32>
    %c31 = arith.constant 31 : index
    %c0_159 = arith.constant 0 : index
    %c0_160 = arith.constant 0 : index
    %314 = vector.load %arg2[%c31, %c0_159, %c0_160] : memref<36x2x256xf32, #tpu.memory_space<vmem>>, vector<1x2x256xf32>
    %315 = vector.shape_cast %314 : vector<1x2x256xf32> to vector<2x256xf32>
    %c31_161 = arith.constant 31 : index
    %c0_162 = arith.constant 0 : index
    %c0_163 = arith.constant 0 : index
    %316 = vector.load %arg3[%c31_161, %c0_162, %c0_163] : memref<36x4x256xf32, #tpu.memory_space<vmem>>, vector<1x4x256xf32>
    %317 = vector.shape_cast %316 : vector<1x4x256xf32> to vector<4x256xf32>
    %318 = vector.shape_cast %315 : vector<2x256xf32> to vector<2x1x256xf32>
    %319 = vector.shape_cast %317 : vector<4x256xf32> to vector<1x4x256xf32>
    %320 = vector.broadcast %318 : vector<2x1x256xf32> to vector<2x4x256xf32>
    %321 = vector.broadcast %319 : vector<1x4x256xf32> to vector<2x4x256xf32>
    %322 = arith.mulf %320, %321 : vector<2x4x256xf32>
    %323 = arith.addf %313, %322 : vector<2x4x256xf32>
    %c32 = arith.constant 32 : index
    %c0_164 = arith.constant 0 : index
    %c0_165 = arith.constant 0 : index
    %324 = vector.load %arg2[%c32, %c0_164, %c0_165] : memref<36x2x256xf32, #tpu.memory_space<vmem>>, vector<1x2x256xf32>
    %325 = vector.shape_cast %324 : vector<1x2x256xf32> to vector<2x256xf32>
    %c32_166 = arith.constant 32 : index
    %c0_167 = arith.constant 0 : index
    %c0_168 = arith.constant 0 : index
    %326 = vector.load %arg3[%c32_166, %c0_167, %c0_168] : memref<36x4x256xf32, #tpu.memory_space<vmem>>, vector<1x4x256xf32>
    %327 = vector.shape_cast %326 : vector<1x4x256xf32> to vector<4x256xf32>
    %328 = vector.shape_cast %325 : vector<2x256xf32> to vector<2x1x256xf32>
    %329 = vector.shape_cast %327 : vector<4x256xf32> to vector<1x4x256xf32>
    %330 = vector.broadcast %328 : vector<2x1x256xf32> to vector<2x4x256xf32>
    %331 = vector.broadcast %329 : vector<1x4x256xf32> to vector<2x4x256xf32>
    %332 = arith.mulf %330, %331 : vector<2x4x256xf32>
    %333 = arith.addf %323, %332 : vector<2x4x256xf32>
    %c33 = arith.constant 33 : index
    %c0_169 = arith.constant 0 : index
    %c0_170 = arith.constant 0 : index
    %334 = vector.load %arg2[%c33, %c0_169, %c0_170] : memref<36x2x256xf32, #tpu.memory_space<vmem>>, vector<1x2x256xf32>
    %335 = vector.shape_cast %334 : vector<1x2x256xf32> to vector<2x256xf32>
    %c33_171 = arith.constant 33 : index
    %c0_172 = arith.constant 0 : index
    %c0_173 = arith.constant 0 : index
    %336 = vector.load %arg3[%c33_171, %c0_172, %c0_173] : memref<36x4x256xf32, #tpu.memory_space<vmem>>, vector<1x4x256xf32>
    %337 = vector.shape_cast %336 : vector<1x4x256xf32> to vector<4x256xf32>
    %338 = vector.shape_cast %335 : vector<2x256xf32> to vector<2x1x256xf32>
    %339 = vector.shape_cast %337 : vector<4x256xf32> to vector<1x4x256xf32>
    %340 = vector.broadcast %338 : vector<2x1x256xf32> to vector<2x4x256xf32>
    %341 = vector.broadcast %339 : vector<1x4x256xf32> to vector<2x4x256xf32>
    %342 = arith.mulf %340, %341 : vector<2x4x256xf32>
    %343 = arith.addf %333, %342 : vector<2x4x256xf32>
    %c34 = arith.constant 34 : index
    %c0_174 = arith.constant 0 : index
    %c0_175 = arith.constant 0 : index
    %344 = vector.load %arg2[%c34, %c0_174, %c0_175] : memref<36x2x256xf32, #tpu.memory_space<vmem>>, vector<1x2x256xf32>
    %345 = vector.shape_cast %344 : vector<1x2x256xf32> to vector<2x256xf32>
    %c34_176 = arith.constant 34 : index
    %c0_177 = arith.constant 0 : index
    %c0_178 = arith.constant 0 : index
    %346 = vector.load %arg3[%c34_176, %c0_177, %c0_178] : memref<36x4x256xf32, #tpu.memory_space<vmem>>, vector<1x4x256xf32>
    %347 = vector.shape_cast %346 : vector<1x4x256xf32> to vector<4x256xf32>
    %348 = vector.shape_cast %345 : vector<2x256xf32> to vector<2x1x256xf32>
    %349 = vector.shape_cast %347 : vector<4x256xf32> to vector<1x4x256xf32>
    %350 = vector.broadcast %348 : vector<2x1x256xf32> to vector<2x4x256xf32>
    %351 = vector.broadcast %349 : vector<1x4x256xf32> to vector<2x4x256xf32>
    %352 = arith.mulf %350, %351 : vector<2x4x256xf32>
    %353 = arith.addf %343, %352 : vector<2x4x256xf32>
    %c35 = arith.constant 35 : index
    %c0_179 = arith.constant 0 : index
    %c0_180 = arith.constant 0 : index
    %354 = vector.load %arg2[%c35, %c0_179, %c0_180] : memref<36x2x256xf32, #tpu.memory_space<vmem>>, vector<1x2x256xf32>
    %355 = vector.shape_cast %354 : vector<1x2x256xf32> to vector<2x256xf32>
    %c35_181 = arith.constant 35 : index
    %c0_182 = arith.constant 0 : index
    %c0_183 = arith.constant 0 : index
    %356 = vector.load %arg3[%c35_181, %c0_182, %c0_183] : memref<36x4x256xf32, #tpu.memory_space<vmem>>, vector<1x4x256xf32>
    %357 = vector.shape_cast %356 : vector<1x4x256xf32> to vector<4x256xf32>
    %358 = vector.shape_cast %355 : vector<2x256xf32> to vector<2x1x256xf32>
    %359 = vector.shape_cast %357 : vector<4x256xf32> to vector<1x4x256xf32>
    %360 = vector.broadcast %358 : vector<2x1x256xf32> to vector<2x4x256xf32>
    %361 = vector.broadcast %359 : vector<1x4x256xf32> to vector<2x4x256xf32>
    %362 = arith.mulf %360, %361 : vector<2x4x256xf32>
    %363 = arith.addf %353, %362 : vector<2x4x256xf32>
    %c0_184 = arith.constant 0 : index
    %c0_185 = arith.constant 0 : index
    %c0_186 = arith.constant 0 : index
    %364 = vector.load %arg6[%c0_184, %c0_185, %c0_186] : memref<2x4x256xf32, #tpu.memory_space<vmem>>, vector<2x4x256xf32>
    tpu.vector_store %arg6[%c0_184, %c0_185, %c0_186], %363 {strides = array<i32>} : memref<2x4x256xf32, #tpu.memory_space<vmem>>, vector<2x4x256xf32>,
    %c0_i32_187 = arith.constant 0 : i32
    %365 = arith.cmpi eq, %arg1, %c0_i32_187 : i32
    %366 = arith.extui %365 : i1 to i32
    %c0_i32_188 = arith.constant 0 : i32
    %367 = arith.cmpi ne, %366, %c0_i32_188 : i32
    scf.if %367 {
      %c0_189 = arith.constant 0 : index
      %c0_190 = arith.constant 0 : index
      %c0_191 = arith.constant 0 : index
      %368 = vector.load %arg6[%c0_189, %c0_190, %c0_191] : memref<2x4x256xf32, #tpu.memory_space<vmem>>, vector<2x4x256xf32>
      %c0_192 = arith.constant 0 : index
      %c0_193 = arith.constant 0 : index
      %c0_194 = arith.constant 0 : index
      %369 = vector.load %arg5[%c0_192, %c0_193, %c0_194] : memref<2x4x256xf32, #tpu.memory_space<vmem>>, vector<2x4x256xf32>
      tpu.vector_store %arg5[%c0_192, %c0_193, %c0_194], %368 {strides = array<i32>} : memref<2x4x256xf32, #tpu.memory_space<vmem>>, vector<2x4x256xf32>,
    } else {
    }
    return
  }
  func.func @transform_0(%arg0: i32, %arg1: i32) -> (i32, i32, i32) {
    %c0_i32 = arith.constant 0 : i32
    %c0_i32_0 = arith.constant 0 : i32
    return %arg1, %c0_i32, %arg0 : i32, i32, i32
  }
  func.func @transform_1(%arg0: i32, %arg1: i32) -> (i32, i32, i32) {
    %c0_i32 = arith.constant 0 : i32
    %c0_i32_0 = arith.constant 0 : i32
    return %arg1, %c0_i32, %arg0 : i32, i32, i32
  }
  func.func @transform_2(%arg0: i32, %arg1: i32) -> (i32, i32) {
    %c0_i32 = arith.constant 0 : i32
    %c0_i32_0 = arith.constant 0 : i32
    return %c0_i32, %arg0 : i32, i32
  }
  func.func @transform_3(%arg0: i32, %arg1: i32) -> (i32, i32, i32) {
    %c0_i32 = arith.constant 0 : i32
    %c0_i32_0 = arith.constant 0 : i32
    %c0_i32_1 = arith.constant 0 : i32
    return %c0_i32, %c0_i32_0, %arg0 : i32, i32, i32
  }
}

</mosaic_0001>

<llo_original>
// kernel: forward.1
$region0: #{forward.1}
  #allocation0 [shape = 'u32[]', space=smem, size = 0x4, offset = 0x4, fixed_abs, tag = 'smem constant byte address 0x4 - core index']
  #allocation1 [shape = 'u32[144,128]{1,0:T(1,128)}', space=vmem, size = 0x12000, scoped, tag = 'internal scratch']
  #allocation2 [shape = 'f32[2,4,256]{2,1,0:T(4,128)}', space=vmem, size = 0x2000, scoped, tag = 'scratch operand']
  %s0 = inlined_call_operand.vmem [shape: f32[36,2,256], index: 0, kind: input, shape index: {}]
  %s1 = inlined_call_operand.vmem [shape: f32[36,4,256], index: 1, kind: input, shape index: {}]
  %s2 = inlined_call_operand.vmem [shape: f32[4,256], index: 2, kind: input, shape index: {}]
  %s3 = inlined_call_operand.vmem [shape: f32[2,4,256], index: 3, kind: output, shape index: {}]
  %s4 = sld [smem:[#allocation0]]
  $region30: #{forward.1} parent=0
    _
  %s6 = ssub.s32 1, %s4
  %s7 = scalar_select 0, %s6, %s4
  // Predicated region
  $region2: #{forward.1} parent=0 // pred_check
    _
  $region3: #{forward.1} parent=0 // pred_check_branch
    %9 = sbr.rel (0) target = $region5
  $region4: #{forward.1} parent=0 // pred_region
    _
  $region5: #{forward.1} parent=0 // pred_fallthru
    _
  // Predicated region
  $region6: #{forward.1} parent=0 // pred_check
    _
  $region7: #{forward.1} parent=0 // pred_check_branch
    %11 = sbr.rel (0) target = $region9
  $region8: #{forward.1} parent=0 // pred_region
    _
  $region9: #{forward.1} parent=0 // pred_fallthru
    _
  // Predicated region
  $region10: #{forward.1} parent=0 // pred_check
    _
  $region11: #{forward.1} parent=0 // pred_check_branch
    %13 = sbr.rel (0) target = $region13
  $region12: #{forward.1} parent=0 // pred_region
    _
  $region13: #{forward.1} parent=0 // pred_fallthru
    _
  %p14 = scmp.eq.s32.totalorder 0, 0
  // Predicated region
  $region14: #{forward.1} parent=0 // pred_check
    %p15 = pneg %p14
  $region15: #{forward.1} parent=0 // pred_check_branch
    %17 = sbr.rel (%p15) target = $region17
  $region16: #{forward.1} parent=0 // pred_region
    %v18 = vld [vmem:[%s2] sm:$0xff]
    %19 = vst [vmem:[#allocation2] sm:$0xff] %v18
    %20 = vst [vmem:[#allocation2 + $0x8] sm:$0xff] %v18
  $region17: #{forward.1} parent=0 // pred_fallthru
    _
  %v21 = vld [vmem:[#allocation2] sm:$0xff]
  %v22 = vld [vmem:[#allocation2 + $0x8] sm:$0xff]
  %v23 = vld [vmem:[%s0] sm:$0xf]
  %v24 = vld [vmem:[%s1] sm:$0xff]
  %v27 = vunpack.c.l.s4 1966171168
  %v28 = vunpack.c.0.s8 %v27
  %v29 = vlaneseq
  %v30 = vshrl.u32 %v29, 7
  %v31 = vsub.s32 %v28, %v30
  %v32 = vrot.slane %v23, %v31
  %v33 = vcombine.high %v32, %v32
  %v34 = vlaneseq
  %v35 = vshrl.u32 %v34, 7
  %v36 = vsub.s32 0, %v35
  %v37 = vrot.slane %v32, %v36
  %v38 = vlaneseq
  %v39 = vshrl.u32 %v38, 7
  %v40 = vsub.s32 1, %v39
  %v41 = vrot.slane %v32, %v40
  %v42 = vlaneseq
  %v43 = vshrl.u32 %v42, 7
  %v44 = vsub.s32 0, %v43
  %v45 = vrot.slane %v33, %v44
  %v46 = vlaneseq
  %v47 = vshrl.u32 %v46, 7
  %v48 = vsub.s32 1, %v47
  %v49 = vrot.slane %v33, %v48
  %v55 = vcombine.high %v24, %v24
  %v57 = vmul.f32 %v37, %v24
  %v58 = vmul.f32 %v41, %v55
  %v59 = vmul.f32 %v45, %v24
  %v60 = vmul.f32 %v49, %v55
  %v65 = vcombine.low %v57, %v58
  %v66 = vcombine.low %v59, %v60
  %v69 = vadd.f32 %v21, %v65
  %v70 = vadd.f32 %v22, %v66
  %s71 = scalar_lea.vmem %s0, 4
  %v72 = vld [vmem:[%s71] sm:$0xf]
  %s73 = scalar_lea.vmem %s1, 8
  %v74 = vld [vmem:[%s73] sm:$0xff]
  %v77 = vunpack.c.l.s4 1966171168
  %v78 = vunpack.c.0.s8 %v77
  %v79 = vlaneseq
  %v80 = vshrl.u32 %v79, 7
  %v81 = vsub.s32 %v78, %v80
  %v82 = vrot.slane %v72, %v81
  %v83 = vcombine.high %v82, %v82
  %v84 = vlaneseq
  %v85 = vshrl.u32 %v84, 7
  %v86 = vsub.s32 0, %v85
  %v87 = vrot.slane %v82, %v86
  %v88 = vlaneseq
  %v89 = vshrl.u32 %v88, 7
  %v90 = vsub.s32 1, %v89
  %v91 = vrot.slane %v82, %v90
  %v92 = vlaneseq
  %v93 = vshrl.u32 %v92, 7
  %v94 = vsub.s32 0, %v93
  %v95 = vrot.slane %v83, %v94
  %v96 = vlaneseq
  %v97 = vshrl.u32 %v96, 7
  %v98 = vsub.s32 1, %v97
  %v99 = vrot.slane %v83, %v98
  %v105 = vcombine.high %v74, %v74
  %v107 = vmul.f32 %v87, %v74
  %v108 = vmul.f32 %v91, %v105
  %v109 = vmul.f32 %v95, %v74
  %v110 = vmul.f32 %v99, %v105
  %v115 = vcombine.low %v107, %v108
  %v116 = vcombine.low %v109, %v110
  %v119 = vadd.f32 %v69, %v115
  %v120 = vadd.f32 %v70, %v116
  %s121 = scalar_lea.vmem %s0, 8
  %v122 = vld [vmem:[%s121] sm:$0xf]
  %s123 = scalar_lea.vmem %s1, 16
  %v124 = vld [vmem:[%s123] sm:$0xff]
  %v127 = vunpack.c.l.s4 1966171168
  %v128 = vunpack.c.0.s8 %v127
  %v129 = vlaneseq
  %v130 = vshrl.u32 %v129, 7
  %v131 = vsub.s32 %v128, %v130
  %v132 = vrot.slane %v122, %v131
  %v133 = vcombine.high %v132, %v132
  %v134 = vlaneseq
  %v135 = vshrl.u32 %v134, 7
  %v136 = vsub.s32 0, %v135
  %v137 = vrot.slane %v132, %v136
  %v138 = vlaneseq
  %v139 = vshrl.u32 %v138, 7
  %v140 = vsub.s32 1, %v139
  %v141 = vrot.slane %v132, %v140
  %v142 = vlaneseq
  %v143 = vshrl.u32 %v142, 7
  %v144 = vsub.s32 0, %v143
  %v145 = vrot.slane %v133, %v144
  %v146 = vlaneseq
  %v147 = vshrl.u32 %v146, 7
  %v148 = vsub.s32 1, %v147
  %v149 = vrot.slane %v133, %v148
  %v155 = vcombine.high %v124, %v124
  %v157 = vmul.f32 %v137, %v124
  %v158 = vmul.f32 %v141, %v155
  %v159 = vmul.f32 %v145, %v124
  %v160 = vmul.f32 %v149, %v155
  %v165 = vcombine.low %v157, %v158
  %v166 = vcombine.low %v159, %v160
  %v169 = vadd.f32 %v119, %v165
  %v170 = vadd.f32 %v120, %v166
  %s171 = scalar_lea.vmem %s0, 12
  %v172 = vld [vmem:[%s171] sm:$0xf]
  %s173 = scalar_lea.vmem %s1, 24
  %v174 = vld [vmem:[%s173] sm:$0xff]
  %v177 = vunpack.c.l.s4 1966171168
  %v178 = vunpack.c.0.s8 %v177
  %v179 = vlaneseq
  %v180 = vshrl.u32 %v179, 7
  %v181 = vsub.s32 %v178, %v180
  %v182 = vrot.slane %v172, %v181
  %v183 = vcombine.high %v182, %v182
  %v184 = vlaneseq
  %v185 = vshrl.u32 %v184, 7
  %v186 = vsub.s32 0, %v185
  %v187 = vrot.slane %v182, %v186
  %v188 = vlaneseq
  %v189 = vshrl.u32 %v188, 7
  %v190 = vsub.s32 1, %v189
  %v191 = vrot.slane %v182, %v190
  %v192 = vlaneseq
  %v193 = vshrl.u32 %v192, 7
  %v194 = vsub.s32 0, %v193
  %v195 = vrot.slane %v183, %v194
  %v196 = vlaneseq
  %v197 = vshrl.u32 %v196, 7
  %v198 = vsub.s32 1, %v197
  %v199 = vrot.slane %v183, %v198
  %v205 = vcombine.high %v174, %v174
  %v207 = vmul.f32 %v187, %v174
  %v208 = vmul.f32 %v191, %v205
  %v209 = vmul.f32 %v195, %v174
  %v210 = vmul.f32 %v199, %v205
  %v215 = vcombine.low %v207, %v208
  %v216 = vcombine.low %v209, %v210
  %v219 = vadd.f32 %v169, %v215
  %v220 = vadd.f32 %v170, %v216
  %s221 = scalar_lea.vmem %s0, 16
  %v222 = vld [vmem:[%s221] sm:$0xf]
  %s223 = scalar_lea.vmem %s1, 32
  %v224 = vld [vmem:[%s223] sm:$0xff]
  %v227 = vunpack.c.l.s4 1966171168
  %v228 = vunpack.c.0.s8 %v227
  %v229 = vlaneseq
  %v230 = vshrl.u32 %v229, 7
  %v231 = vsub.s32 %v228, %v230
  %v232 = vrot.slane %v222, %v231
  %v233 = vcombine.high %v232, %v232
  %v234 = vlaneseq
  %v235 = vshrl.u32 %v234, 7
  %v236 = vsub.s32 0, %v235
  %v237 = vrot.slane %v232, %v236
  %v238 = vlaneseq
  %v239 = vshrl.u32 %v238, 7
  %v240 = vsub.s32 1, %v239
  %v241 = vrot.slane %v232, %v240
  %v242 = vlaneseq
  %v243 = vshrl.u32 %v242, 7
  %v244 = vsub.s32 0, %v243
  %v245 = vrot.slane %v233, %v244
  %v246 = vlaneseq
  %v247 = vshrl.u32 %v246, 7
  %v248 = vsub.s32 1, %v247
  %v249 = vrot.slane %v233, %v248
  %v255 = vcombine.high %v224, %v224
  %v257 = vmul.f32 %v237, %v224
  %v258 = vmul.f32 %v241, %v255
  %v259 = vmul.f32 %v245, %v224
  %v260 = vmul.f32 %v249, %v255
  %v265 = vcombine.low %v257, %v258
  %v266 = vcombine.low %v259, %v260
  %v269 = vadd.f32 %v219, %v265
  %v270 = vadd.f32 %v220, %v266
  %s271 = scalar_lea.vmem %s0, 20
  %v272 = vld [vmem:[%s271] sm:$0xf]
  %s273 = scalar_lea.vmem %s1, 40
  %v274 = vld [vmem:[%s273] sm:$0xff]
  %v277 = vunpack.c.l.s4 1966171168
  %v278 = vunpack.c.0.s8 %v277
  %v279 = vlaneseq
  %v280 = vshrl.u32 %v279, 7
  %v281 = vsub.s32 %v278, %v280
  %v282 = vrot.slane %v272, %v281
  %v283 = vcombine.high %v282, %v282
  %v284 = vlaneseq
  %v285 = vshrl.u32 %v284, 7
  %v286 = vsub.s32 0, %v285
  %v287 = vrot.slane %v282, %v286
  %v288 = vlaneseq
  %v289 = vshrl.u32 %v288, 7
  %v290 = vsub.s32 1, %v289
  %v291 = vrot.slane %v282, %v290
  %v292 = vlaneseq
  %v293 = vshrl.u32 %v292, 7
  %v294 = vsub.s32 0, %v293
  %v295 = vrot.slane %v283, %v294
  %v296 = vlaneseq
  %v297 = vshrl.u32 %v296, 7
  %v298 = vsub.s32 1, %v297
  %v299 = vrot.slane %v283, %v298
  %v305 = vcombine.high %v274, %v274
  %v307 = vmul.f32 %v287, %v274
  %v308 = vmul.f32 %v291, %v305
  %v309 = vmul.f32 %v295, %v274
  %v310 = vmul.f32 %v299, %v305
  %v315 = vcombine.low %v307, %v308
  %v316 = vcombine.low %v309, %v310
  %v319 = vadd.f32 %v269, %v315
  %v320 = vadd.f32 %v270, %v316
  %s321 = scalar_lea.vmem %s0, 24
  %v322 = vld [vmem:[%s321] sm:$0xf]
  %s323 = scalar_lea.vmem %s1, 48
  %v324 = vld [vmem:[%s323] sm:$0xff]
  %v327 = vunpack.c.l.s4 1966171168
  %v328 = vunpack.c.0.s8 %v327
  %v329 = vlaneseq
  %v330 = vshrl.u32 %v329, 7
  %v331 = vsub.s32 %v328, %v330
  %v332 = vrot.slane %v322, %v331
  %v333 = vcombine.high %v332, %v332
  %v334 = vlaneseq
  %v335 = vshrl.u32 %v334, 7
  %v336 = vsub.s32 0, %v335
  %v337 = vrot.slane %v332, %v336
  %v338 = vlaneseq
  %v339 = vshrl.u32 %v338, 7
  %v340 = vsub.s32 1, %v339
  %v341 = vrot.slane %v332, %v340
  %v342 = vlaneseq
  %v343 = vshrl.u32 %v342, 7
  %v344 = vsub.s32 0, %v343
  %v345 = vrot.slane %v333, %v344
  %v346 = vlaneseq
  %v347 = vshrl.u32 %v346, 7
  %v348 = vsub.s32 1, %v347
  %v349 = vrot.slane %v333, %v348
  %v355 = vcombine.high %v324, %v324
  %v357 = vmul.f32 %v337, %v324
  %v358 = vmul.f32 %v341, %v355
  %v359 = vmul.f32 %v345, %v324
  %v360 = vmul.f32 %v349, %v355
  %v365 = vcombine.low %v357, %v358
  %v366 = vcombine.low %v359, %v360
  %v369 = vadd.f32 %v319, %v365
  %v370 = vadd.f32 %v320, %v366
  %s371 = scalar_lea.vmem %s0, 28
  %v372 = vld [vmem:[%s371] sm:$0xf]
  %s373 = scalar_lea.vmem %s1, 56
  %v374 = vld [vmem:[%s373] sm:$0xff]
  %v377 = vunpack.c.l.s4 1966171168
  %v378 = vunpack.c.0.s8 %v377
  %v379 = vlaneseq
  %v380 = vshrl.u32 %v379, 7
  %v381 = vsub.s32 %v378, %v380
  %v382 = vrot.slane %v372, %v381
  %v383 = vcombine.high %v382, %v382
  %v384 = vlaneseq
  %v385 = vshrl.u32 %v384, 7
  %v386 = vsub.s32 0, %v385
  %v387 = vrot.slane %v382, %v386
  %v388 = vlaneseq
  %v389 = vshrl.u32 %v388, 7
  %v390 = vsub.s32 1, %v389
  %v391 = vrot.slane %v382, %v390
  %v392 = vlaneseq
  %v393 = vshrl.u32 %v392, 7
  %v394 = vsub.s32 0, %v393
  %v395 = vrot.slane %v383, %v394
  %v396 = vlaneseq
  %v397 = vshrl.u32 %v396, 7
  %v398 = vsub.s32 1, %v397
  %v399 = vrot.slane %v383, %v398
  %v405 = vcombine.high %v374, %v374
  %v407 = vmul.f32 %v387, %v374
  %v408 = vmul.f32 %v391, %v405
  %v409 = vmul.f32 %v395, %v374
  %v410 = vmul.f32 %v399, %v405
  %v415 = vcombine.low %v407, %v408
  %v416 = vcombine.low %v409, %v410
  %v419 = vadd.f32 %v369, %v415
  %v420 = vadd.f32 %v370, %v416
  %s421 = scalar_lea.vmem %s0, 32
  %v422 = vld [vmem:[%s421] sm:$0xf]
  %s423 = scalar_lea.vmem %s1, 64
  %v424 = vld [vmem:[%s423] sm:$0xff]
  %v427 = vunpack.c.l.s4 1966171168
  %v428 = vunpack.c.0.s8 %v427
  %v429 = vlaneseq
  %v430 = vshrl.u32 %v429, 7
  %v431 = vsub.s32 %v428, %v430
  %v432 = vrot.slane %v422, %v431
  %v433 = vcombine.high %v432, %v432
  %v434 = vlaneseq
  %v435 = vshrl.u32 %v434, 7
  %v436 = vsub.s32 0, %v435
  %v437 = vrot.slane %v432, %v436
  %v438 = vlaneseq
  %v439 = vshrl.u32 %v438, 7
  %v440 = vsub.s32 1, %v439
  %v441 = vrot.slane %v432, %v440
  %v442 = vlaneseq
  %v443 = vshrl.u32 %v442, 7
  %v444 = vsub.s32 0, %v443
  %v445 = vrot.slane %v433, %v444
  %v446 = vlaneseq
  %v447 = vshrl.u32 %v446, 7
  %v448 = vsub.s32 1, %v447
  %v449 = vrot.slane %v433, %v448
  %v455 = vcombine.high %v424, %v424
  %v457 = vmul.f32 %v437, %v424
  %v458 = vmul.f32 %v441, %v455
  %v459 = vmul.f32 %v445, %v424
  %v460 = vmul.f32 %v449, %v455
  %v465 = vcombine.low %v457, %v458
  %v466 = vcombine.low %v459, %v460
  %v469 = vadd.f32 %v419, %v465
  %v470 = vadd.f32 %v420, %v466
  %s471 = scalar_lea.vmem %s0, 36
  %v472 = vld [vmem:[%s471] sm:$0xf]
  %s473 = scalar_lea.vmem %s1, 72
  %v474 = vld [vmem:[%s473] sm:$0xff]
  %v477 = vunpack.c.l.s4 1966171168
  %v478 = vunpack.c.0.s8 %v477
  %v479 = vlaneseq
  %v480 = vshrl.u32 %v479, 7
  %v481 = vsub.s32 %v478, %v480
  %v482 = vrot.slane %v472, %v481
  %v483 = vcombine.high %v482, %v482
  %v484 = vlaneseq
  %v485 = vshrl.u32 %v484, 7
  %v486 = vsub.s32 0, %v485
  %v487 = vrot.slane %v482, %v486
  %v488 = vlaneseq
  %v489 = vshrl.u32 %v488, 7
  %v490 = vsub.s32 1, %v489
  %v491 = vrot.slane %v482, %v490
  %v492 = vlaneseq
  %v493 = vshrl.u32 %v492, 7
  %v494 = vsub.s32 0, %v493
  %v495 = vrot.slane %v483, %v494
  %v496 = vlaneseq
  %v497 = vshrl.u32 %v496, 7
  %v498 = vsub.s32 1, %v497
  %v499 = vrot.slane %v483, %v498
  %v505 = vcombine.high %v474, %v474
  %v507 = vmul.f32 %v487, %v474
  %v508 = vmul.f32 %v491, %v505
  %v509 = vmul.f32 %v495, %v474
  %v510 = vmul.f32 %v499, %v505
  %v515 = vcombine.low %v507, %v508
  %v516 = vcombine.low %v509, %v510
  %v519 = vadd.f32 %v469, %v515
  %v520 = vadd.f32 %v470, %v516
  %s521 = scalar_lea.vmem %s0, 40
  %v522 = vld [vmem:[%s521] sm:$0xf]
  %s523 = scalar_lea.vmem %s1, 80
  %v524 = vld [vmem:[%s523] sm:$0xff]
  %v527 = vunpack.c.l.s4 1966171168
  %v528 = vunpack.c.0.s8 %v527
  %v529 = vlaneseq
  %v530 = vshrl.u32 %v529, 7
  %v531 = vsub.s32 %v528, %v530
  %v532 = vrot.slane %v522, %v531
  %v533 = vcombine.high %v532, %v532
  %v534 = vlaneseq
  %v535 = vshrl.u32 %v534, 7
  %v536 = vsub.s32 0, %v535
  %v537 = vrot.slane %v532, %v536
  %v538 = vlaneseq
  %v539 = vshrl.u32 %v538, 7
  %v540 = vsub.s32 1, %v539
  %v541 = vrot.slane %v532, %v540
  %v542 = vlaneseq
  %v543 = vshrl.u32 %v542, 7
  %v544 = vsub.s32 0, %v543
  %v545 = vrot.slane %v533, %v544
  %v546 = vlaneseq
  %v547 = vshrl.u32 %v546, 7
  %v548 = vsub.s32 1, %v547
  %v549 = vrot.slane %v533, %v548
  %v555 = vcombine.high %v524, %v524
  %v557 = vmul.f32 %v537, %v524
  %v558 = vmul.f32 %v541, %v555
  %v559 = vmul.f32 %v545, %v524
  %v560 = vmul.f32 %v549, %v555
  %v565 = vcombine.low %v557, %v558
  %v566 = vcombine.low %v559, %v560
  %v569 = vadd.f32 %v519, %v565
  %v570 = vadd.f32 %v520, %v566
  %s571 = scalar_lea.vmem %s0, 44
  %v572 = vld [vmem:[%s571] sm:$0xf]
  %s573 = scalar_lea.vmem %s1, 88
  %v574 = vld [vmem:[%s573] sm:$0xff]
  %v577 = vunpack.c.l.s4 1966171168
  %v578 = vunpack.c.0.s8 %v577
  %v579 = vlaneseq
  %v580 = vshrl.u32 %v579, 7
  %v581 = vsub.s32 %v578, %v580
  %v582 = vrot.slane %v572, %v581
  %v583 = vcombine.high %v582, %v582
  %v584 = vlaneseq
  %v585 = vshrl.u32 %v584, 7
  %v586 = vsub.s32 0, %v585
  %v587 = vrot.slane %v582, %v586
  %v588 = vlaneseq
  %v589 = vshrl.u32 %v588, 7
  %v590 = vsub.s32 1, %v589
  %v591 = vrot.slane %v582, %v590
  %v592 = vlaneseq
  %v593 = vshrl.u32 %v592, 7
  %v594 = vsub.s32 0, %v593
  %v595 = vrot.slane %v583, %v594
  %v596 = vlaneseq
  %v597 = vshrl.u32 %v596, 7
  %v598 = vsub.s32 1, %v597
  %v599 = vrot.slane %v583, %v598
  %v605 = vcombine.high %v574, %v574
  %v607 = vmul.f32 %v587, %v574
  %v608 = vmul.f32 %v591, %v605
  %v609 = vmul.f32 %v595, %v574
  %v610 = vmul.f32 %v599, %v605
  %v615 = vcombine.low %v607, %v608
  %v616 = vcombine.low %v609, %v610
  %v619 = vadd.f32 %v569, %v615
  %v620 = vadd.f32 %v570, %v616
  %s621 = scalar_lea.vmem %s0, 48
  %v622 = vld [vmem:[%s621] sm:$0xf]
  %s623 = scalar_lea.vmem %s1, 96
  %v624 = vld [vmem:[%s623] sm:$0xff]
  %v627 = vunpack.c.l.s4 1966171168
  %v628 = vunpack.c.0.s8 %v627
  %v629 = vlaneseq
  %v630 = vshrl.u32 %v629, 7
  %v631 = vsub.s32 %v628, %v630
  %v632 = vrot.slane %v622, %v631
  %v633 = vcombine.high %v632, %v632
  %v634 = vlaneseq
  %v635 = vshrl.u32 %v634, 7
  %v636 = vsub.s32 0, %v635
  %v637 = vrot.slane %v632, %v636
  %v638 = vlaneseq
  %v639 = vshrl.u32 %v638, 7
  %v640 = vsub.s32 1, %v639
  %v641 = vrot.slane %v632, %v640
  %v642 = vlaneseq
  %v643 = vshrl.u32 %v642, 7
  %v644 = vsub.s32 0, %v643
  %v645 = vrot.slane %v633, %v644
  %v646 = vlaneseq
  %v647 = vshrl.u32 %v646, 7
  %v648 = vsub.s32 1, %v647
  %v649 = vrot.slane %v633, %v648
  %v655 = vcombine.high %v624, %v624
  %v657 = vmul.f32 %v637, %v624
  %v658 = vmul.f32 %v641, %v655
  %v659 = vmul.f32 %v645, %v624
  %v660 = vmul.f32 %v649, %v655
  %v665 = vcombine.low %v657, %v658
  %v666 = vcombine.low %v659, %v660
  %v669 = vadd.f32 %v619, %v665
  %v670 = vadd.f32 %v620, %v666
  %s671 = scalar_lea.vmem %s0, 52
  %v672 = vld [vmem:[%s671] sm:$0xf]
  %s673 = scalar_lea.vmem %s1, 104
  %v674 = vld [vmem:[%s673] sm:$0xff]
  %v677 = vunpack.c.l.s4 1966171168
  %v678 = vunpack.c.0.s8 %v677
  %v679 = vlaneseq
  %v680 = vshrl.u32 %v679, 7
  %v681 = vsub.s32 %v678, %v680
  %v682 = vrot.slane %v672, %v681
  %v683 = vcombine.high %v682, %v682
  %v684 = vlaneseq
  %v685 = vshrl.u32 %v684, 7
  %v686 = vsub.s32 0, %v685
  %v687 = vrot.slane %v682, %v686
  %v688 = vlaneseq
  %v689 = vshrl.u32 %v688, 7
  %v690 = vsub.s32 1, %v689
  %v691 = vrot.slane %v682, %v690
  %v692 = vlaneseq
  %v693 = vshrl.u32 %v692, 7
  %v694 = vsub.s32 0, %v693
  %v695 = vrot.slane %v683, %v694
  %v696 = vlaneseq
  %v697 = vshrl.u32 %v696, 7
  %v698 = vsub.s32 1, %v697
  %v699 = vrot.slane %v683, %v698
  %v705 = vcombine.high %v674, %v674
  %v707 = vmul.f32 %v687, %v674
  %v708 = vmul.f32 %v691, %v705
  %v709 = vmul.f32 %v695, %v674
  %v710 = vmul.f32 %v699, %v705
  %v715 = vcombine.low %v707, %v708
  %v716 = vcombine.low %v709, %v710
  %v719 = vadd.f32 %v669, %v715
  %v720 = vadd.f32 %v670, %v716
  %s721 = scalar_lea.vmem %s0, 56
  %v722 = vld [vmem:[%s721] sm:$0xf]
  %s723 = scalar_lea.vmem %s1, 112
  %v724 = vld [vmem:[%s723] sm:$0xff]
  %v727 = vunpack.c.l.s4 1966171168
  %v728 = vunpack.c.0.s8 %v727
  %v729 = vlaneseq
  %v730 = vshrl.u32 %v729, 7
  %v731 = vsub.s32 %v728, %v730
  %v732 = vrot.slane %v722, %v731
  %v733 = vcombine.high %v732, %v732
  %v734 = vlaneseq
  %v735 = vshrl.u32 %v734, 7
  %v736 = vsub.s32 0, %v735
  %v737 = vrot.slane %v732, %v736
  %v738 = vlaneseq
  %v739 = vshrl.u32 %v738, 7
  %v740 = vsub.s32 1, %v739
  %v741 = vrot.slane %v732, %v740
  %v742 = vlaneseq
  %v743 = vshrl.u32 %v742, 7
  %v744 = vsub.s32 0, %v743
  %v745 = vrot.slane %v733, %v744
  %v746 = vlaneseq
  %v747 = vshrl.u32 %v746, 7
  %v748 = vsub.s32 1, %v747
  %v749 = vrot.slane %v733, %v748
  %v755 = vcombine.high %v724, %v724
  %v757 = vmul.f32 %v737, %v724
  %v758 = vmul.f32 %v741, %v755
  %v759 = vmul.f32 %v745, %v724
  %v760 = vmul.f32 %v749, %v755
  %v765 = vcombine.low %v757, %v758
  %v766 = vcombine.low %v759, %v760
  %v769 = vadd.f32 %v719, %v765
  %v770 = vadd.f32 %v720, %v766
  %s771 = scalar_lea.vmem %s0, 60
  %v772 = vld [vmem:[%s771] sm:$0xf]
  %s773 = scalar_lea.vmem %s1, 120
  %v774 = vld [vmem:[%s773] sm:$0xff]
  %v777 = vunpack.c.l.s4 1966171168
  %v778 = vunpack.c.0.s8 %v777
  %v779 = vlaneseq
  %v780 = vshrl.u32 %v779, 7
  %v781 = vsub.s32 %v778, %v780
  %v782 = vrot.slane %v772, %v781
  %v783 = vcombine.high %v782, %v782
  %v784 = vlaneseq
  %v785 = vshrl.u32 %v784, 7
  %v786 = vsub.s32 0, %v785
  %v787 = vrot.slane %v782, %v786
  %v788 = vlaneseq
  %v789 = vshrl.u32 %v788, 7
  %v790 = vsub.s32 1, %v789
  %v791 = vrot.slane %v782, %v790
  %v792 = vlaneseq
  %v793 = vshrl.u32 %v792, 7
  %v794 = vsub.s32 0, %v793
  %v795 = vrot.slane %v783, %v794
  %v796 = vlaneseq
  %v797 = vshrl.u32 %v796, 7
  %v798 = vsub.s32 1, %v797
  %v799 = vrot.slane %v783, %v798
  %v805 = vcombine.high %v774, %v774
  %v807 = vmul.f32 %v787, %v774
  %v808 = vmul.f32 %v791, %v805
  %v809 = vmul.f32 %v795, %v774
  %v810 = vmul.f32 %v799, %v805
  %v815 = vcombine.low %v807, %v808
  %v816 = vcombine.low %v809, %v810
  %v819 = vadd.f32 %v769, %v815
  %v820 = vadd.f32 %v770, %v816
  %s821 = scalar_lea.vmem %s0, 64
  %v822 = vld [vmem:[%s821] sm:$0xf]
  %s823 = scalar_lea.vmem %s1, 128
  %v824 = vld [vmem:[%s823] sm:$0xff]
  %v827 = vunpack.c.l.s4 1966171168
  %v828 = vunpack.c.0.s8 %v827
  %v829 = vlaneseq
  %v830 = vshrl.u32 %v829, 7
  %v831 = vsub.s32 %v828, %v830
  %v832 = vrot.slane %v822, %v831
  %v833 = vcombine.high %v832, %v832
  %v834 = vlaneseq
  %v835 = vshrl.u32 %v834, 7
  %v836 = vsub.s32 0, %v835
  %v837 = vrot.slane %v832, %v836
  %v838 = vlaneseq
  %v839 = vshrl.u32 %v838, 7
  %v840 = vsub.s32 1, %v839
  %v841 = vrot.slane %v832, %v840
  %v842 = vlaneseq
  %v843 = vshrl.u32 %v842, 7
  %v844 = vsub.s32 0, %v843
  %v845 = vrot.slane %v833, %v844
  %v846 = vlaneseq
  %v847 = vshrl.u32 %v846, 7
  %v848 = vsub.s32 1, %v847
  %v849 = vrot.slane %v833, %v848
  %v855 = vcombine.high %v824, %v824
  %v857 = vmul.f32 %v837, %v824
  %v858 = vmul.f32 %v841, %v855
  %v859 = vmul.f32 %v845, %v824
  %v860 = vmul.f32 %v849, %v855
  %v865 = vcombine.low %v857, %v858
  %v866 = vcombine.low %v859, %v860
  %v869 = vadd.f32 %v819, %v865
  %v870 = vadd.f32 %v820, %v866
  %s871 = scalar_lea.vmem %s0, 68
  %v872 = vld [vmem:[%s871] sm:$0xf]
  %s873 = scalar_lea.vmem %s1, 136
  %v874 = vld [vmem:[%s873] sm:$0xff]
  %v877 = vunpack.c.l.s4 1966171168
  %v878 = vunpack.c.0.s8 %v877
  %v879 = vlaneseq
  %v880 = vshrl.u32 %v879, 7
  %v881 = vsub.s32 %v878, %v880
  %v882 = vrot.slane %v872, %v881
  %v883 = vcombine.high %v882, %v882
  %v884 = vlaneseq
  %v885 = vshrl.u32 %v884, 7
  %v886 = vsub.s32 0, %v885
  %v887 = vrot.slane %v882, %v886
  %v888 = vlaneseq
  %v889 = vshrl.u32 %v888, 7
  %v890 = vsub.s32 1, %v889
  %v891 = vrot.slane %v882, %v890
  %v892 = vlaneseq
  %v893 = vshrl.u32 %v892, 7
  %v894 = vsub.s32 0, %v893
  %v895 = vrot.slane %v883, %v894
  %v896 = vlaneseq
  %v897 = vshrl.u32 %v896, 7
  %v898 = vsub.s32 1, %v897
  %v899 = vrot.slane %v883, %v898
  %v905 = vcombine.high %v874, %v874
  %v907 = vmul.f32 %v887, %v874
  %v908 = vmul.f32 %v891, %v905
  %v909 = vmul.f32 %v895, %v874
  %v910 = vmul.f32 %v899, %v905
  %v915 = vcombine.low %v907, %v908
  %v916 = vcombine.low %v909, %v910
  %v919 = vadd.f32 %v869, %v915
  %v920 = vadd.f32 %v870, %v916
  %s921 = scalar_lea.vmem %s0, 72
  %v922 = vld [vmem:[%s921] sm:$0xf]
  %s923 = scalar_lea.vmem %s1, 144
  %v924 = vld [vmem:[%s923] sm:$0xff]
  %v927 = vunpack.c.l.s4 1966171168
  %v928 = vunpack.c.0.s8 %v927
  %v929 = vlaneseq
  %v930 = vshrl.u32 %v929, 7
  %v931 = vsub.s32 %v928, %v930
  %v932 = vrot.slane %v922, %v931
  %v933 = vcombine.high %v932, %v932
  %v934 = vlaneseq
  %v935 = vshrl.u32 %v934, 7
  %v936 = vsub.s32 0, %v935
  %v937 = vrot.slane %v932, %v936
  %v938 = vlaneseq
  %v939 = vshrl.u32 %v938, 7
  %v940 = vsub.s32 1, %v939
  %v941 = vrot.slane %v932, %v940
  %v942 = vlaneseq
  %v943 = vshrl.u32 %v942, 7
  %v944 = vsub.s32 0, %v943
  %v945 = vrot.slane %v933, %v944
  %v946 = vlaneseq
  %v947 = vshrl.u32 %v946, 7
  %v948 = vsub.s32 1, %v947
  %v949 = vrot.slane %v933, %v948
  %v955 = vcombine.high %v924, %v924
  %v957 = vmul.f32 %v937, %v924
  %v958 = vmul.f32 %v941, %v955
  %v959 = vmul.f32 %v945, %v924
  %v960 = vmul.f32 %v949, %v955
  %v965 = vcombine.low %v957, %v958
  %v966 = vcombine.low %v959, %v960
  %v969 = vadd.f32 %v919, %v965
  %v970 = vadd.f32 %v920, %v966
  %s971 = scalar_lea.vmem %s0, 76
  %v972 = vld [vmem:[%s971] sm:$0xf]
  %s973 = scalar_lea.vmem %s1, 152
  %v974 = vld [vmem:[%s973] sm:$0xff]
  %v977 = vunpack.c.l.s4 1966171168
  %v978 = vunpack.c.0.s8 %v977
  %v979 = vlaneseq
  %v980 = vshrl.u32 %v979, 7
  %v981 = vsub.s32 %v978, %v980
  %v982 = vrot.slane %v972, %v981
  %v983 = vcombine.high %v982, %v982
  %v984 = vlaneseq
  %v985 = vshrl.u32 %v984, 7
  %v986 = vsub.s32 0, %v985
  %v987 = vrot.slane %v982, %v986
  %v988 = vlaneseq
  %v989 = vshrl.u32 %v988, 7
  %v990 = vsub.s32 1, %v989
  %v991 = vrot.slane %v982, %v990
  %v992 = vlaneseq
  %v993 = vshrl.u32 %v992, 7
  %v994 = vsub.s32 0, %v993
  %v995 = vrot.slane %v983, %v994
  %v996 = vlaneseq
  %v997 = vshrl.u32 %v996, 7
  %v998 = vsub.s32 1, %v997
  %v999 = vrot.slane %v983, %v998
  %v1005 = vcombine.high %v974, %v974
  %v1007 = vmul.f32 %v987, %v974
  %v1008 = vmul.f32 %v991, %v1005
  %v1009 = vmul.f32 %v995, %v974
  %v1010 = vmul.f32 %v999, %v1005
  %v1015 = vcombine.low %v1007, %v1008
  %v1016 = vcombine.low %v1009, %v1010
  %v1019 = vadd.f32 %v969, %v1015
  %v1020 = vadd.f32 %v970, %v1016
  %s1021 = scalar_lea.vmem %s0, 80
  %v1022 = vld [vmem:[%s1021] sm:$0xf]
  %s1023 = scalar_lea.vmem %s1, 160
  %v1024 = vld [vmem:[%s1023] sm:$0xff]
  %v1027 = vunpack.c.l.s4 1966171168
  %v1028 = vunpack.c.0.s8 %v1027
  %v1029 = vlaneseq
  %v1030 = vshrl.u32 %v1029, 7
  %v1031 = vsub.s32 %v1028, %v1030
  %v1032 = vrot.slane %v1022, %v1031
  %v1033 = vcombine.high %v1032, %v1032
  %v1034 = vlaneseq
  %v1035 = vshrl.u32 %v1034, 7
  %v1036 = vsub.s32 0, %v1035
  %v1037 = vrot.slane %v1032, %v1036
  %v1038 = vlaneseq
  %v1039 = vshrl.u32 %v1038, 7
  %v1040 = vsub.s32 1, %v1039
  %v1041 = vrot.slane %v1032, %v1040
  %v1042 = vlaneseq
  %v1043 = vshrl.u32 %v1042, 7
  %v1044 = vsub.s32 0, %v1043
  %v1045 = vrot.slane %v1033, %v1044
  %v1046 = vlaneseq
  %v1047 = vshrl.u32 %v1046, 7
  %v1048 = vsub.s32 1, %v1047
  %v1049 = vrot.slane %v1033, %v1048
  %v1055 = vcombine.high %v1024, %v1024
  %v1057 = vmul.f32 %v1037, %v1024
  %v1058 = vmul.f32 %v1041, %v1055
  %v1059 = vmul.f32 %v1045, %v1024
  %v1060 = vmul.f32 %v1049, %v1055
  %v1065 = vcombine.low %v1057, %v1058
  %v1066 = vcombine.low %v1059, %v1060
  %v1069 = vadd.f32 %v1019, %v1065
  %v1070 = vadd.f32 %v1020, %v1066
  %s1071 = scalar_lea.vmem %s0, 84
  %v1072 = vld [vmem:[%s1071] sm:$0xf]
  %s1073 = scalar_lea.vmem %s1, 168
  %v1074 = vld [vmem:[%s1073] sm:$0xff]
  %v1077 = vunpack.c.l.s4 1966171168
  %v1078 = vunpack.c.0.s8 %v1077
  %v1079 = vlaneseq
  %v1080 = vshrl.u32 %v1079, 7
  %v1081 = vsub.s32 %v1078, %v1080
  %v1082 = vrot.slane %v1072, %v1081
  %v1083 = vcombine.high %v1082, %v1082
  %v1084 = vlaneseq
  %v1085 = vshrl.u32 %v1084, 7
  %v1086 = vsub.s32 0, %v1085
  %v1087 = vrot.slane %v1082, %v1086
  %v1088 = vlaneseq
  %v1089 = vshrl.u32 %v1088, 7
  %v1090 = vsub.s32 1, %v1089
  %v1091 = vrot.slane %v1082, %v1090
  %v1092 = vlaneseq
  %v1093 = vshrl.u32 %v1092, 7
  %v1094 = vsub.s32 0, %v1093
  %v1095 = vrot.slane %v1083, %v1094
  %v1096 = vlaneseq
  %v1097 = vshrl.u32 %v1096, 7
  %v1098 = vsub.s32 1, %v1097
  %v1099 = vrot.slane %v1083, %v1098
  %v1105 = vcombine.high %v1074, %v1074
  %v1107 = vmul.f32 %v1087, %v1074
  %v1108 = vmul.f32 %v1091, %v1105
  %v1109 = vmul.f32 %v1095, %v1074
  %v1110 = vmul.f32 %v1099, %v1105
  %v1115 = vcombine.low %v1107, %v1108
  %v1116 = vcombine.low %v1109, %v1110
  %v1119 = vadd.f32 %v1069, %v1115
  %v1120 = vadd.f32 %v1070, %v1116
  %s1121 = scalar_lea.vmem %s0, 88
  %v1122 = vld [vmem:[%s1121] sm:$0xf]
  %s1123 = scalar_lea.vmem %s1, 176
  %v1124 = vld [vmem:[%s1123] sm:$0xff]
  %v1127 = vunpack.c.l.s4 1966171168
  %v1128 = vunpack.c.0.s8 %v1127
  %v1129 = vlaneseq
  %v1130 = vshrl.u32 %v1129, 7
  %v1131 = vsub.s32 %v1128, %v1130
  %v1132 = vrot.slane %v1122, %v1131
  %v1133 = vcombine.high %v1132, %v1132
  %v1134 = vlaneseq
  %v1135 = vshrl.u32 %v1134, 7
  %v1136 = vsub.s32 0, %v1135
  %v1137 = vrot.slane %v1132, %v1136
  %v1138 = vlaneseq
  %v1139 = vshrl.u32 %v1138, 7
  %v1140 = vsub.s32 1, %v1139
  %v1141 = vrot.slane %v1132, %v1140
  %v1142 = vlaneseq
  %v1143 = vshrl.u32 %v1142, 7
  %v1144 = vsub.s32 0, %v1143
  %v1145 = vrot.slane %v1133, %v1144
  %v1146 = vlaneseq
  %v1147 = vshrl.u32 %v1146, 7
  %v1148 = vsub.s32 1, %v1147
  %v1149 = vrot.slane %v1133, %v1148
  %v1155 = vcombine.high %v1124, %v1124
  %v1157 = vmul.f32 %v1137, %v1124
  %v1158 = vmul.f32 %v1141, %v1155
  %v1159 = vmul.f32 %v1145, %v1124
  %v1160 = vmul.f32 %v1149, %v1155
  %v1165 = vcombine.low %v1157, %v1158
  %v1166 = vcombine.low %v1159, %v1160
  %v1169 = vadd.f32 %v1119, %v1165
  %v1170 = vadd.f32 %v1120, %v1166
  %s1171 = scalar_lea.vmem %s0, 92
  %v1172 = vld [vmem:[%s1171] sm:$0xf]
  %s1173 = scalar_lea.vmem %s1, 184
  %v1174 = vld [vmem:[%s1173] sm:$0xff]
  %v1177 = vunpack.c.l.s4 1966171168
  %v1178 = vunpack.c.0.s8 %v1177
  %v1179 = vlaneseq
  %v1180 = vshrl.u32 %v1179, 7
  %v1181 = vsub.s32 %v1178, %v1180
  %v1182 = vrot.slane %v1172, %v1181
  %v1183 = vcombine.high %v1182, %v1182
  %v1184 = vlaneseq
  %v1185 = vshrl.u32 %v1184, 7
  %v1186 = vsub.s32 0, %v1185
  %v1187 = vrot.slane %v1182, %v1186
  %v1188 = vlaneseq
  %v1189 = vshrl.u32 %v1188, 7
  %v1190 = vsub.s32 1, %v1189
  %v1191 = vrot.slane %v1182, %v1190
  %v1192 = vlaneseq
  %v1193 = vshrl.u32 %v1192, 7
  %v1194 = vsub.s32 0, %v1193
  %v1195 = vrot.slane %v1183, %v1194
  %v1196 = vlaneseq
  %v1197 = vshrl.u32 %v1196, 7
  %v1198 = vsub.s32 1, %v1197
  %v1199 = vrot.slane %v1183, %v1198
  %v1205 = vcombine.high %v1174, %v1174
  %v1207 = vmul.f32 %v1187, %v1174
  %v1208 = vmul.f32 %v1191, %v1205
  %v1209 = vmul.f32 %v1195, %v1174
  %v1210 = vmul.f32 %v1199, %v1205
  %v1215 = vcombine.low %v1207, %v1208
  %v1216 = vcombine.low %v1209, %v1210
  %v1219 = vadd.f32 %v1169, %v1215
  %v1220 = vadd.f32 %v1170, %v1216
  %s1221 = scalar_lea.vmem %s0, 96
  %v1222 = vld [vmem:[%s1221] sm:$0xf]
  %s1223 = scalar_lea.vmem %s1, 192
  %v1224 = vld [vmem:[%s1223] sm:$0xff]
  %v1227 = vunpack.c.l.s4 1966171168
  %v1228 = vunpack.c.0.s8 %v1227
  %v1229 = vlaneseq
  %v1230 = vshrl.u32 %v1229, 7
  %v1231 = vsub.s32 %v1228, %v1230
  %v1232 = vrot.slane %v1222, %v1231
  %v1233 = vcombine.high %v1232, %v1232
  %v1234 = vlaneseq
  %v1235 = vshrl.u32 %v1234, 7
  %v1236 = vsub.s32 0, %v1235
  %v1237 = vrot.slane %v1232, %v1236
  %v1238 = vlaneseq
  %v1239 = vshrl.u32 %v1238, 7
  %v1240 = vsub.s32 1, %v1239
  %v1241 = vrot.slane %v1232, %v1240
  %v1242 = vlaneseq
  %v1243 = vshrl.u32 %v1242, 7
  %v1244 = vsub.s32 0, %v1243
  %v1245 = vrot.slane %v1233, %v1244
  %v1246 = vlaneseq
  %v1247 = vshrl.u32 %v1246, 7
  %v1248 = vsub.s32 1, %v1247
  %v1249 = vrot.slane %v1233, %v1248
  %v1255 = vcombine.high %v1224, %v1224
  %v1257 = vmul.f32 %v1237, %v1224
  %v1258 = vmul.f32 %v1241, %v1255
  %v1259 = vmul.f32 %v1245, %v1224
  %v1260 = vmul.f32 %v1249, %v1255
  %v1265 = vcombine.low %v1257, %v1258
  %v1266 = vcombine.low %v1259, %v1260
  %v1269 = vadd.f32 %v1219, %v1265
  %v1270 = vadd.f32 %v1220, %v1266
  %s1271 = scalar_lea.vmem %s0, 100
  %v1272 = vld [vmem:[%s1271] sm:$0xf]
  %s1273 = scalar_lea.vmem %s1, 200
  %v1274 = vld [vmem:[%s1273] sm:$0xff]
  %v1277 = vunpack.c.l.s4 1966171168
  %v1278 = vunpack.c.0.s8 %v1277
  %v1279 = vlaneseq
  %v1280 = vshrl.u32 %v1279, 7
  %v1281 = vsub.s32 %v1278, %v1280
  %v1282 = vrot.slane %v1272, %v1281
  %v1283 = vcombine.high %v1282, %v1282
  %v1284 = vlaneseq
  %v1285 = vshrl.u32 %v1284, 7
  %v1286 = vsub.s32 0, %v1285
  %v1287 = vrot.slane %v1282, %v1286
  %v1288 = vlaneseq
  %v1289 = vshrl.u32 %v1288, 7
  %v1290 = vsub.s32 1, %v1289
  %v1291 = vrot.slane %v1282, %v1290
  %v1292 = vlaneseq
  %v1293 = vshrl.u32 %v1292, 7
  %v1294 = vsub.s32 0, %v1293
  %v1295 = vrot.slane %v1283, %v1294
  %v1296 = vlaneseq
  %v1297 = vshrl.u32 %v1296, 7
  %v1298 = vsub.s32 1, %v1297
  %v1299 = vrot.slane %v1283, %v1298
  %v1305 = vcombine.high %v1274, %v1274
  %v1307 = vmul.f32 %v1287, %v1274
  %v1308 = vmul.f32 %v1291, %v1305
  %v1309 = vmul.f32 %v1295, %v1274
  %v1310 = vmul.f32 %v1299, %v1305
  %v1315 = vcombine.low %v1307, %v1308
  %v1316 = vcombine.low %v1309, %v1310
  %v1319 = vadd.f32 %v1269, %v1315
  %v1320 = vadd.f32 %v1270, %v1316
  %s1321 = scalar_lea.vmem %s0, 104
  %v1322 = vld [vmem:[%s1321] sm:$0xf]
  %s1323 = scalar_lea.vmem %s1, 208
  %v1324 = vld [vmem:[%s1323] sm:$0xff]
  %v1327 = vunpack.c.l.s4 1966171168
  %v1328 = vunpack.c.0.s8 %v1327
  %v1329 = vlaneseq
  %v1330 = vshrl.u32 %v1329, 7
  %v1331 = vsub.s32 %v1328, %v1330
  %v1332 = vrot.slane %v1322, %v1331
  %v1333 = vcombine.high %v1332, %v1332
  %v1334 = vlaneseq
  %v1335 = vshrl.u32 %v1334, 7
  %v1336 = vsub.s32 0, %v1335
  %v1337 = vrot.slane %v1332, %v1336
  %v1338 = vlaneseq
  %v1339 = vshrl.u32 %v1338, 7
  %v1340 = vsub.s32 1, %v1339
  %v1341 = vrot.slane %v1332, %v1340
  %v1342 = vlaneseq
  %v1343 = vshrl.u32 %v1342, 7
  %v1344 = vsub.s32 0, %v1343
  %v1345 = vrot.slane %v1333, %v1344
  %v1346 = vlaneseq
  %v1347 = vshrl.u32 %v1346, 7
  %v1348 = vsub.s32 1, %v1347
  %v1349 = vrot.slane %v1333, %v1348
  %v1355 = vcombine.high %v1324, %v1324
  %v1357 = vmul.f32 %v1337, %v1324
  %v1358 = vmul.f32 %v1341, %v1355
  %v1359 = vmul.f32 %v1345, %v1324
  %v1360 = vmul.f32 %v1349, %v1355
  %v1365 = vcombine.low %v1357, %v1358
  %v1366 = vcombine.low %v1359, %v1360
  %v1369 = vadd.f32 %v1319, %v1365
  %v1370 = vadd.f32 %v1320, %v1366
  %s1371 = scalar_lea.vmem %s0, 108
  %v1372 = vld [vmem:[%s1371] sm:$0xf]
  %s1373 = scalar_lea.vmem %s1, 216
  %v1374 = vld [vmem:[%s1373] sm:$0xff]
  %v1377 = vunpack.c.l.s4 1966171168
  %v1378 = vunpack.c.0.s8 %v1377
  %v1379 = vlaneseq
  %v1380 = vshrl.u32 %v1379, 7
  %v1381 = vsub.s32 %v1378, %v1380
  %v1382 = vrot.slane %v1372, %v1381
  %v1383 = vcombine.high %v1382, %v1382
  %v1384 = vlaneseq
  %v1385 = vshrl.u32 %v1384, 7
  %v1386 = vsub.s32 0, %v1385
  %v1387 = vrot.slane %v1382, %v1386
  %v1388 = vlaneseq
  %v1389 = vshrl.u32 %v1388, 7
  %v1390 = vsub.s32 1, %v1389
  %v1391 = vrot.slane %v1382, %v1390
  %v1392 = vlaneseq
  %v1393 = vshrl.u32 %v1392, 7
  %v1394 = vsub.s32 0, %v1393
  %v1395 = vrot.slane %v1383, %v1394
  %v1396 = vlaneseq
  %v1397 = vshrl.u32 %v1396, 7
  %v1398 = vsub.s32 1, %v1397
  %v1399 = vrot.slane %v1383, %v1398
  %v1405 = vcombine.high %v1374, %v1374
  %v1407 = vmul.f32 %v1387, %v1374
  %v1408 = vmul.f32 %v1391, %v1405
  %v1409 = vmul.f32 %v1395, %v1374
  %v1410 = vmul.f32 %v1399, %v1405
  %v1415 = vcombine.low %v1407, %v1408
  %v1416 = vcombine.low %v1409, %v1410
  %v1419 = vadd.f32 %v1369, %v1415
  %v1420 = vadd.f32 %v1370, %v1416
  %s1421 = scalar_lea.vmem %s0, 112
  %v1422 = vld [vmem:[%s1421] sm:$0xf]
  %s1423 = scalar_lea.vmem %s1, 224
  %v1424 = vld [vmem:[%s1423] sm:$0xff]
  %v1427 = vunpack.c.l.s4 1966171168
  %v1428 = vunpack.c.0.s8 %v1427
  %v1429 = vlaneseq
  %v1430 = vshrl.u32 %v1429, 7
  %v1431 = vsub.s32 %v1428, %v1430
  %v1432 = vrot.slane %v1422, %v1431
  %v1433 = vcombine.high %v1432, %v1432
  %v1434 = vlaneseq
  %v1435 = vshrl.u32 %v1434, 7
  %v1436 = vsub.s32 0, %v1435
  %v1437 = vrot.slane %v1432, %v1436
  %v1438 = vlaneseq
  %v1439 = vshrl.u32 %v1438, 7
  %v1440 = vsub.s32 1, %v1439
  %v1441 = vrot.slane %v1432, %v1440
  %v1442 = vlaneseq
  %v1443 = vshrl.u32 %v1442, 7
  %v1444 = vsub.s32 0, %v1443
  %v1445 = vrot.slane %v1433, %v1444
  %v1446 = vlaneseq
  %v1447 = vshrl.u32 %v1446, 7
  %v1448 = vsub.s32 1, %v1447
  %v1449 = vrot.slane %v1433, %v1448
  %v1455 = vcombine.high %v1424, %v1424
  %v1457 = vmul.f32 %v1437, %v1424
  %v1458 = vmul.f32 %v1441, %v1455
  %v1459 = vmul.f32 %v1445, %v1424
  %v1460 = vmul.f32 %v1449, %v1455
  %v1465 = vcombine.low %v1457, %v1458
  %v1466 = vcombine.low %v1459, %v1460
  %v1469 = vadd.f32 %v1419, %v1465
  %v1470 = vadd.f32 %v1420, %v1466
  %s1471 = scalar_lea.vmem %s0, 116
  %v1472 = vld [vmem:[%s1471] sm:$0xf]
  %s1473 = scalar_lea.vmem %s1, 232
  %v1474 = vld [vmem:[%s1473] sm:$0xff]
  %v1477 = vunpack.c.l.s4 1966171168
  %v1478 = vunpack.c.0.s8 %v1477
  %v1479 = vlaneseq
  %v1480 = vshrl.u32 %v1479, 7
  %v1481 = vsub.s32 %v1478, %v1480
  %v1482 = vrot.slane %v1472, %v1481
  %v1483 = vcombine.high %v1482, %v1482
  %v1484 = vlaneseq
  %v1485 = vshrl.u32 %v1484, 7
  %v1486 = vsub.s32 0, %v1485
  %v1487 = vrot.slane %v1482, %v1486
  %v1488 = vlaneseq
  %v1489 = vshrl.u32 %v1488, 7
  %v1490 = vsub.s32 1, %v1489
  %v1491 = vrot.slane %v1482, %v1490
  %v1492 = vlaneseq
  %v1493 = vshrl.u32 %v1492, 7
  %v1494 = vsub.s32 0, %v1493
  %v1495 = vrot.slane %v1483, %v1494
  %v1496 = vlaneseq
  %v1497 = vshrl.u32 %v1496, 7
  %v1498 = vsub.s32 1, %v1497
  %v1499 = vrot.slane %v1483, %v1498
  %v1505 = vcombine.high %v1474, %v1474
  %v1507 = vmul.f32 %v1487, %v1474
  %v1508 = vmul.f32 %v1491, %v1505
  %v1509 = vmul.f32 %v1495, %v1474
  %v1510 = vmul.f32 %v1499, %v1505
  %v1515 = vcombine.low %v1507, %v1508
  %v1516 = vcombine.low %v1509, %v1510
  %v1519 = vadd.f32 %v1469, %v1515
  %v1520 = vadd.f32 %v1470, %v1516
  %s1521 = scalar_lea.vmem %s0, 120
  %v1522 = vld [vmem:[%s1521] sm:$0xf]
  %s1523 = scalar_lea.vmem %s1, 240
  %v1524 = vld [vmem:[%s1523] sm:$0xff]
  %v1527 = vunpack.c.l.s4 1966171168
  %v1528 = vunpack.c.0.s8 %v1527
  %v1529 = vlaneseq
  %v1530 = vshrl.u32 %v1529, 7
  %v1531 = vsub.s32 %v1528, %v1530
  %v1532 = vrot.slane %v1522, %v1531
  %v1533 = vcombine.high %v1532, %v1532
  %v1534 = vlaneseq
  %v1535 = vshrl.u32 %v1534, 7
  %v1536 = vsub.s32 0, %v1535
  %v1537 = vrot.slane %v1532, %v1536
  %v1538 = vlaneseq
  %v1539 = vshrl.u32 %v1538, 7
  %v1540 = vsub.s32 1, %v1539
  %v1541 = vrot.slane %v1532, %v1540
  %v1542 = vlaneseq
  %v1543 = vshrl.u32 %v1542, 7
  %v1544 = vsub.s32 0, %v1543
  %v1545 = vrot.slane %v1533, %v1544
  %v1546 = vlaneseq
  %v1547 = vshrl.u32 %v1546, 7
  %v1548 = vsub.s32 1, %v1547
  %v1549 = vrot.slane %v1533, %v1548
  %v1555 = vcombine.high %v1524, %v1524
  %v1557 = vmul.f32 %v1537, %v1524
  %v1558 = vmul.f32 %v1541, %v1555
  %v1559 = vmul.f32 %v1545, %v1524
  %v1560 = vmul.f32 %v1549, %v1555
  %v1565 = vcombine.low %v1557, %v1558
  %v1566 = vcombine.low %v1559, %v1560
  %v1569 = vadd.f32 %v1519, %v1565
  %v1570 = vadd.f32 %v1520, %v1566
  %s1571 = scalar_lea.vmem %s0, 124
  %v1572 = vld [vmem:[%s1571] sm:$0xf]
  %s1573 = scalar_lea.vmem %s1, 248
  %v1574 = vld [vmem:[%s1573] sm:$0xff]
  %v1577 = vunpack.c.l.s4 1966171168
  %v1578 = vunpack.c.0.s8 %v1577
  %v1579 = vlaneseq
  %v1580 = vshrl.u32 %v1579, 7
  %v1581 = vsub.s32 %v1578, %v1580
  %v1582 = vrot.slane %v1572, %v1581
  %v1583 = vcombine.high %v1582, %v1582
  %v1584 = vlaneseq
  %v1585 = vshrl.u32 %v1584, 7
  %v1586 = vsub.s32 0, %v1585
  %v1587 = vrot.slane %v1582, %v1586
  %v1588 = vlaneseq
  %v1589 = vshrl.u32 %v1588, 7
  %v1590 = vsub.s32 1, %v1589
  %v1591 = vrot.slane %v1582, %v1590
  %v1592 = vlaneseq
  %v1593 = vshrl.u32 %v1592, 7
  %v1594 = vsub.s32 0, %v1593
  %v1595 = vrot.slane %v1583, %v1594
  %v1596 = vlaneseq
  %v1597 = vshrl.u32 %v1596, 7
  %v1598 = vsub.s32 1, %v1597
  %v1599 = vrot.slane %v1583, %v1598
  %v1605 = vcombine.high %v1574, %v1574
  %v1607 = vmul.f32 %v1587, %v1574
  %v1608 = vmul.f32 %v1591, %v1605
  %v1609 = vmul.f32 %v1595, %v1574
  %v1610 = vmul.f32 %v1599, %v1605
  %v1615 = vcombine.low %v1607, %v1608
  %v1616 = vcombine.low %v1609, %v1610
  %v1619 = vadd.f32 %v1569, %v1615
  %v1620 = vadd.f32 %v1570, %v1616
  %s1621 = scalar_lea.vmem %s0, 128
  %v1622 = vld [vmem:[%s1621] sm:$0xf]
  %s1623 = scalar_lea.vmem %s1, 256
  %v1624 = vld [vmem:[%s1623] sm:$0xff]
  %v1627 = vunpack.c.l.s4 1966171168
  %v1628 = vunpack.c.0.s8 %v1627
  %v1629 = vlaneseq
  %v1630 = vshrl.u32 %v1629, 7
  %v1631 = vsub.s32 %v1628, %v1630
  %v1632 = vrot.slane %v1622, %v1631
  %v1633 = vcombine.high %v1632, %v1632
  %v1634 = vlaneseq
  %v1635 = vshrl.u32 %v1634, 7
  %v1636 = vsub.s32 0, %v1635
  %v1637 = vrot.slane %v1632, %v1636
  %v1638 = vlaneseq
  %v1639 = vshrl.u32 %v1638, 7
  %v1640 = vsub.s32 1, %v1639
  %v1641 = vrot.slane %v1632, %v1640
  %v1642 = vlaneseq
  %v1643 = vshrl.u32 %v1642, 7
  %v1644 = vsub.s32 0, %v1643
  %v1645 = vrot.slane %v1633, %v1644
  %v1646 = vlaneseq
  %v1647 = vshrl.u32 %v1646, 7
  %v1648 = vsub.s32 1, %v1647
  %v1649 = vrot.slane %v1633, %v1648
  %v1655 = vcombine.high %v1624, %v1624
  %v1657 = vmul.f32 %v1637, %v1624
  %v1658 = vmul.f32 %v1641, %v1655
  %v1659 = vmul.f32 %v1645, %v1624
  %v1660 = vmul.f32 %v1649, %v1655
  %v1665 = vcombine.low %v1657, %v1658
  %v1666 = vcombine.low %v1659, %v1660
  %v1669 = vadd.f32 %v1619, %v1665
  %v1670 = vadd.f32 %v1620, %v1666
  %s1671 = scalar_lea.vmem %s0, 132
  %v1672 = vld [vmem:[%s1671] sm:$0xf]
  %s1673 = scalar_lea.vmem %s1, 264
  %v1674 = vld [vmem:[%s1673] sm:$0xff]
  %v1677 = vunpack.c.l.s4 1966171168
  %v1678 = vunpack.c.0.s8 %v1677
  %v1679 = vlaneseq
  %v1680 = vshrl.u32 %v1679, 7
  %v1681 = vsub.s32 %v1678, %v1680
  %v1682 = vrot.slane %v1672, %v1681
  %v1683 = vcombine.high %v1682, %v1682
  %v1684 = vlaneseq
  %v1685 = vshrl.u32 %v1684, 7
  %v1686 = vsub.s32 0, %v1685
  %v1687 = vrot.slane %v1682, %v1686
  %v1688 = vlaneseq
  %v1689 = vshrl.u32 %v1688, 7
  %v1690 = vsub.s32 1, %v1689
  %v1691 = vrot.slane %v1682, %v1690
  %v1692 = vlaneseq
  %v1693 = vshrl.u32 %v1692, 7
  %v1694 = vsub.s32 0, %v1693
  %v1695 = vrot.slane %v1683, %v1694
  %v1696 = vlaneseq
  %v1697 = vshrl.u32 %v1696, 7
  %v1698 = vsub.s32 1, %v1697
  %v1699 = vrot.slane %v1683, %v1698
  %v1705 = vcombine.high %v1674, %v1674
  %v1707 = vmul.f32 %v1687, %v1674
  %v1708 = vmul.f32 %v1691, %v1705
  %v1709 = vmul.f32 %v1695, %v1674
  %v1710 = vmul.f32 %v1699, %v1705
  %v1715 = vcombine.low %v1707, %v1708
  %v1716 = vcombine.low %v1709, %v1710
  %v1719 = vadd.f32 %v1669, %v1715
  %v1720 = vadd.f32 %v1670, %v1716
  %s1721 = scalar_lea.vmem %s0, 136
  %v1722 = vld [vmem:[%s1721] sm:$0xf]
  %s1723 = scalar_lea.vmem %s1, 272
  %v1724 = vld [vmem:[%s1723] sm:$0xff]
  %v1727 = vunpack.c.l.s4 1966171168
  %v1728 = vunpack.c.0.s8 %v1727
  %v1729 = vlaneseq
  %v1730 = vshrl.u32 %v1729, 7
  %v1731 = vsub.s32 %v1728, %v1730
  %v1732 = vrot.slane %v1722, %v1731
  %v1733 = vcombine.high %v1732, %v1732
  %v1734 = vlaneseq
  %v1735 = vshrl.u32 %v1734, 7
  %v1736 = vsub.s32 0, %v1735
  %v1737 = vrot.slane %v1732, %v1736
  %v1738 = vlaneseq
  %v1739 = vshrl.u32 %v1738, 7
  %v1740 = vsub.s32 1, %v1739
  %v1741 = vrot.slane %v1732, %v1740
  %v1742 = vlaneseq
  %v1743 = vshrl.u32 %v1742, 7
  %v1744 = vsub.s32 0, %v1743
  %v1745 = vrot.slane %v1733, %v1744
  %v1746 = vlaneseq
  %v1747 = vshrl.u32 %v1746, 7
  %v1748 = vsub.s32 1, %v1747
  %v1749 = vrot.slane %v1733, %v1748
  %v1755 = vcombine.high %v1724, %v1724
  %v1757 = vmul.f32 %v1737, %v1724
  %v1758 = vmul.f32 %v1741, %v1755
  %v1759 = vmul.f32 %v1745, %v1724
  %v1760 = vmul.f32 %v1749, %v1755
  %v1765 = vcombine.low %v1757, %v1758
  %v1766 = vcombine.low %v1759, %v1760
  %v1769 = vadd.f32 %v1719, %v1765
  %v1770 = vadd.f32 %v1720, %v1766
  %s1771 = scalar_lea.vmem %s0, 140
  %v1772 = vld [vmem:[%s1771] sm:$0xf]
  %s1773 = scalar_lea.vmem %s1, 280
  %v1774 = vld [vmem:[%s1773] sm:$0xff]
  %v1777 = vunpack.c.l.s4 1966171168
  %v1778 = vunpack.c.0.s8 %v1777
  %v1779 = vlaneseq
  %v1780 = vshrl.u32 %v1779, 7
  %v1781 = vsub.s32 %v1778, %v1780
  %v1782 = vrot.slane %v1772, %v1781
  %v1783 = vcombine.high %v1782, %v1782
  %v1784 = vlaneseq
  %v1785 = vshrl.u32 %v1784, 7
  %v1786 = vsub.s32 0, %v1785
  %v1787 = vrot.slane %v1782, %v1786
  %v1788 = vlaneseq
  %v1789 = vshrl.u32 %v1788, 7
  %v1790 = vsub.s32 1, %v1789
  %v1791 = vrot.slane %v1782, %v1790
  %v1792 = vlaneseq
  %v1793 = vshrl.u32 %v1792, 7
  %v1794 = vsub.s32 0, %v1793
  %v1795 = vrot.slane %v1783, %v1794
  %v1796 = vlaneseq
  %v1797 = vshrl.u32 %v1796, 7
  %v1798 = vsub.s32 1, %v1797
  %v1799 = vrot.slane %v1783, %v1798
  %v1805 = vcombine.high %v1774, %v1774
  %v1807 = vmul.f32 %v1787, %v1774
  %v1808 = vmul.f32 %v1791, %v1805
  %v1809 = vmul.f32 %v1795, %v1774
  %v1810 = vmul.f32 %v1799, %v1805
  %v1815 = vcombine.low %v1807, %v1808
  %v1816 = vcombine.low %v1809, %v1810
  %v1819 = vadd.f32 %v1769, %v1815
  %v1820 = vadd.f32 %v1770, %v1816
  %1821 = vst [vmem:[#allocation2] sm:$0xff] %v1819
  %1822 = vst [vmem:[#allocation2 + $0x8] sm:$0xff] %v1820
  // Predicated region
  $region18: #{forward.1} parent=0 // pred_check
    %p1823 = pneg %p14
  $region19: #{forward.1} parent=0 // pred_check_branch
    %1825 = sbr.rel (%p1823) target = $region21
  $region20: #{forward.1} parent=0 // pred_region
    %v1826 = vld [vmem:[#allocation2] sm:$0xff]
    %v1827 = vld [vmem:[#allocation2 + $0x8] sm:$0xff]
    %1828 = vst [vmem:[%s3] sm:$0xff] %v1826
    %1829 = vst [vmem:[%s3 + $0x8] sm:$0xff] %v1827
  $region21: #{forward.1} parent=0 // pred_fallthru
    _
  // Predicated region
  $region22: #{forward.1} parent=0 // pred_check
    _
  $region23: #{forward.1} parent=0 // pred_check_branch
    %1831 = sbr.rel (0) target = $region25
  $region24: #{forward.1} parent=0 // pred_region
    _
  $region25: #{forward.1} parent=0 // pred_fallthru
    _
  // Predicated region
  $region26: #{forward.1} parent=0 // pred_check
    _
  $region27: #{forward.1} parent=0 // pred_check_branch
    %1833 = sbr.rel (0) target = $region29
  $region28: #{forward.1} parent=0 // pred_region
    _
  $region29: #{forward.1} parent=0 // pred_fallthru
    _

</llo_original>
